<compile_context>
chip_gen: v7x
topology: tpu7x:2x2x1
jax: 0.10.0
libtpu: 0.0.40
codegen_flags: <defaults>
</compile_context>

<pallas_src>
import functools

import jax
import jax.numpy as jnp
import numpy as np
from jax.experimental import pallas as pl
from jax.experimental.pallas import tpu as pltpu


def _additive_attention_kernel(q_ref, k_ref, v_ref, vlen_ref,
                               wq_ref, wk_ref, wv_ref,
                               o_ref,
                               *, compute_dtype):
    f32 = jnp.float32
    Bblk, Q, _ = q_ref.shape
    _, K, _ = k_ref.shape
    H = wq_ref.shape[1]

    # --- Projections (MXU), batched over the Bblk examples of this block. ----
    # Weights are tiny, so broadcasting them along the batch keeps this a plain
    # batched matmul (same pattern the reference flash kernel uses) and avoids
    # any in-kernel reshape / relayout of the activations.
    wq_b = jnp.broadcast_to(wq_ref[...], (Bblk,) + wq_ref.shape)
    wk_b = jnp.broadcast_to(wk_ref[...], (Bblk,) + wk_ref.shape)
    qp = jnp.einsum('bqd,bdh->bqh', q_ref[...], wq_b,
                    preferred_element_type=f32)               # (Bblk, Q, H)
    kp = jnp.einsum('bkd,bdh->bkh', k_ref[...], wk_b,
                    preferred_element_type=f32)               # (Bblk, K, H)

    # --- Additive features, H lane-dense: no per-h loop, no kp transpose. ----
    feat = jnp.tanh((qp[:, :, None, :] + kp[:, None, :, :]).astype(compute_dtype))
    feat = feat.astype(f32)                                   # (Bblk, Q, K, H)

    # scores = <feat, w_v>: one VPU multiply + one XLU reduce over the H lanes.
    # (H < 128 already occupies a single lane group per vreg, so zero-padding H
    #  to 128 would not reduce the number of vector issues - skipped on purpose.)
    wv4 = wv_ref[...].reshape(1, 1, 1, H)
    scores = jnp.sum(feat * wv4, axis=-1)                     # (Bblk, Q, K)

    # --- Masked softmax over keys, fused across the whole batch block. -------
    # d2l masked_softmax semantics: invalid positions get -1e6; if a row is
    # fully masked this degenerates to uniform weights, as in the reference.
    col = jax.lax.broadcasted_iota(jnp.int32, (Bblk, Q, K), 2)
    scores = jnp.where(col < vlen_ref[...], scores, f32(-1e6))
    m = jnp.max(scores, axis=-1, keepdims=True)
    e = jnp.exp(scores - m)
    denom = jnp.sum(e, axis=-1, keepdims=True)
    attn = e * pl.reciprocal(denom, approx=True)              # (Bblk, Q, K) f32

    # --- attn @ V: one batched MXU contraction for the whole block. ----------
    out = jnp.einsum('bqk,bkd->bqd', attn.astype(compute_dtype), v_ref[...],
                     preferred_element_type=f32)              # (Bblk, Q, Dv)
    o_ref[...] = out.astype(o_ref.dtype)


def _device_kind():
    try:
        return (jax.devices()[0].device_kind or "").lower()
    except Exception:
        return ""


def _choose_batch_block(B, Q, K, H, *, max_rows, prefer_multi_step):
    """Largest divisor of B such that the per-step row extent stays around one
    MXU tile, the (Bblk, Q, K, H) tanh intermediate stays small, and - only on
    dual-TensorCore chips (v7x) - the grid keeps >= 2 steps so both cores get
    work.  Blocks only split the leading batch dim, so there is no (8, 128)
    divisibility constraint to satisfy."""
    best = 1
    for cand in range(1, B + 1):
        if B % cand:
            continue
        if cand * max(Q, K) > max_rows:
            continue
        if 4 * cand * Q * K * H > (4 << 20):      # keep the tanh intermediate modest
            continue
        if prefer_multi_step and B >= 2 and B // cand < 2:
            continue
        best = cand
    return best


def additive_attention(queries, keys, values, valid_lens, Wq, Wk, wv,
                       *, compute_dtype=jnp.float32, batch_block=None):
    B, Q, Dq = queries.shape
    _, K, Dk = keys.shape
    _, _, Dv = values.shape
    H = Wq.shape[1]

    if valid_lens.ndim != 1:
        # TODO(synk): 2-D (per-query) valid_lens is not implemented.
        raise NotImplementedError("only 1-D (per-batch) valid_lens is supported")

    kind = _device_kind()
    is_v7x = "v7" in kind
    is_v5e = ("v5e" in kind) or ("v5 lite" in kind) or ("v5litepod" in kind)

    # Generation gating: bf16 compute only pays off where the VPU/EUP have a
    # bf16 path (v6e / v7x); on v5e fall back to f32.
    if compute_dtype == jnp.bfloat16 and is_v5e:
        compute_dtype = jnp.float32
    use_bf16 = compute_dtype == jnp.bfloat16
    max_rows = 256 if use_bf16 else 128            # fill the 256x256 MXU on v6e/v7x

    if batch_block is None:
        Bblk = _choose_batch_block(B, Q, K, H, max_rows=max_rows,
                                   prefer_multi_step=is_v7x)
    else:
        Bblk = batch_block
    assert B % Bblk == 0
    num_blocks = B // Bblk

    cdt = compute_dtype
    q_c = queries.astype(cdt)
    k_c = keys.astype(cdt)
    v_c = values.astype(cdt)
    wq_c = Wq.astype(cdt)
    wk_c = Wk.astype(cdt)
    wv_c = wv.reshape(1, H).astype(jnp.float32)    # stays f32 on the accumulation path
    vlen3 = valid_lens.astype(jnp.int32).reshape(B, 1, 1)

    kernel = functools.partial(_additive_attention_kernel, compute_dtype=cdt)

    grid_spec = pltpu.PrefetchScalarGridSpec(
        num_scalar_prefetch=0,
        grid=(num_blocks,),
        in_specs=[
            pl.BlockSpec((Bblk, Q, Dq), lambda i: (i, 0, 0)),
            pl.BlockSpec((Bblk, K, Dk), lambda i: (i, 0, 0)),
            pl.BlockSpec((Bblk, K, Dv), lambda i: (i, 0, 0)),
            pl.BlockSpec((Bblk, 1, 1), lambda i: (i, 0, 0)),
            pl.BlockSpec((Dq, H), lambda i: (0, 0)),
            pl.BlockSpec((Dk, H), lambda i: (0, 0)),
            pl.BlockSpec((1, H), lambda i: (0, 0)),
        ],
        out_specs=pl.BlockSpec((Bblk, Q, Dv), lambda i: (i, 0, 0)),
    )

    # Advisory cost estimate: additive attention is transcendental-heavy.
    itemsize = jnp.dtype(cdt).itemsize
    flops = int(2 * B * Q * Dq * H + 2 * B * K * Dk * H
                + 3 * B * Q * K * H + 2 * B * Q * K * Dv + 6 * B * Q * K)
    transcendentals = int(B * Q * K * H + B * Q * K + B * Q)
    bytes_accessed = int(itemsize * (B * Q * Dq + B * K * Dk + B * K * Dv
                                     + Dq * H + Dk * H)
                         + 4 * (B * Q * Dv + H + B))
    cost = pl.CostEstimate(flops=flops, transcendentals=transcendentals,
                           bytes_accessed=bytes_accessed)

    # VMEM budget: ~3x the double-buffered block bytes + in-kernel
    # intermediates, floored for Mosaic's internal scratch and capped at 32 MiB
    # so it stays friendly on v7x's 64 MiB physical VMEM (shared by 2 cores).
    block_bytes = (itemsize * Bblk * (Q * Dq + K * Dk + K * Dv)
                   + itemsize * (Dq * H + Dk * H)
                   + 4 * (H + Bblk) + 4 * Bblk * Q * Dv)
    interm_bytes = (4 * Bblk * (Q * H + K * H + Q * K * H + 3 * Q * K + Q * Dv)
                    + itemsize * Bblk * (Dq * H + Dk * H))
    vmem_limit = int(min(32 << 20, max(8 << 20, 3 * 2 * block_bytes + 2 * interm_bytes)))

    out = pl.pallas_call(
        kernel,
        out_shape=jax.ShapeDtypeStruct((B, Q, Dv), jnp.float32),
        grid_spec=grid_spec,
        compiler_params=pltpu.CompilerParams(
            dimension_semantics=("parallel",),
            vmem_limit_bytes=vmem_limit),
        cost_estimate=cost,
    )(q_c, k_c, v_c, vlen3, wq_c, wk_c, wv_c)
    return out


def additive_attention_ref(queries, keys, values, valid_lens, Wq, Wk, wv):
    """Pure-JAX reference matching the PyTorch module (eval mode)."""
    qp = queries @ Wq                                        # (B, Q, H)
    kp = keys @ Wk                                           # (B, K, H)
    feat = jnp.tanh(qp[:, :, None, :] + kp[:, None, :, :])   # (B, Q, K, H)
    scores = jnp.squeeze(feat @ wv, -1)                      # (B, Q, K)
    mask = jnp.arange(scores.shape[-1])[None, None, :] < valid_lens[:, None, None]
    scores = jnp.where(mask, scores, -1e6)
    attn = jax.nn.softmax(scores, axis=-1)
    return jnp.einsum('bqk,bkd->bqd', attn, values)


if __name__ == "__main__":
    # Small shapes implied by the forward pass.
    B, Q, K = 4, 8, 8
    Dq, Dk, Dv, H = 16, 24, 32, 32

    key = jax.random.PRNGKey(0)
    kq, kk, kv, kwq, kwk, kwv = jax.random.split(key, 6)

    queries = jax.random.normal(kq, (B, Q, Dq), dtype=jnp.float32)
    keys = jax.random.normal(kk, (B, K, Dk), dtype=jnp.float32)
    values = jax.random.normal(kv, (B, K, Dv), dtype=jnp.float32)
    valid_lens = jnp.array([3, 6, 8, 5], dtype=jnp.int32)

    # Deterministic parameter init (LazyLinear weights, no bias), stored transposed.
    Wq = jax.random.normal(kwq, (Dq, H), dtype=jnp.float32) * 0.1
    Wk = jax.random.normal(kwk, (Dk, H), dtype=jnp.float32) * 0.1
    wv = jax.random.normal(kwv, (H, 1), dtype=jnp.float32) * 0.1

    ref = additive_attention_ref(queries, keys, values, valid_lens, Wq, Wk, wv)

    # Default f32 path (safe on all TPU generations; bf16 is opt-in on v6e/v7x).
    out = additive_attention(queries, keys, values, valid_lens, Wq, Wk, wv)
    out = jax.block_until_ready(out)
    np.testing.assert_allclose(np.asarray(out), np.asarray(ref),
                               rtol=5e-3, atol=5e-3)

    # Exercise the multi-block grid path (2 grid steps) as well, still f32.
    out2 = additive_attention(queries, keys, values, valid_lens, Wq, Wk, wv,
                              batch_block=2)
    out2 = jax.block_until_ready(out2)
    np.testing.assert_allclose(np.asarray(out2), np.asarray(ref),
                               rtol=5e-3, atol=5e-3)

    print("KERNEL_OK")
</pallas_src>

<mosaic_0001>
module attributes {stable_mosaic.version = 11 : i64} {
  func.func @_additive_attention_kernel(%arg0: i32, %arg1: memref<4x8x16xf32, #tpu.memory_space<vmem>>, %arg2: memref<4x8x24xf32, #tpu.memory_space<vmem>>, %arg3: memref<4x8x32xf32, #tpu.memory_space<vmem>>, %arg4: memref<4x1x1xi32, #tpu.memory_space<vmem>>, %arg5: memref<16x32xf32, #tpu.memory_space<vmem>>, %arg6: memref<24x32xf32, #tpu.memory_space<vmem>>, %arg7: memref<1x32xf32, #tpu.memory_space<vmem>>, %arg8: memref<4x8x32xf32, #tpu.memory_space<vmem>>) attributes {dimension_semantics = [#tpu.dimension_semantics<parallel>], iteration_bounds = array<i64: 1>, scalar_prefetch = 0 : i64, scratch_operands = 0 : i64, tpu.core_type = #tpu.core_type<tc>, window_params = [{transform_indices = @transform_0, window_bounds = array<i64: 4, 8, 16>}, {transform_indices = @transform_1, window_bounds = array<i64: 4, 8, 24>}, {transform_indices = @transform_2, window_bounds = array<i64: 4, 8, 32>}, {transform_indices = @transform_3, window_bounds = array<i64: 4, 1, 1>}, {pipeline_mode = #tpu.pipeline_mode<synchronous>, transform_indices = @transform_4, window_bounds = array<i64: 16, 32>}, {pipeline_mode = #tpu.pipeline_mode<synchronous>, transform_indices = @transform_5, window_bounds = array<i64: 24, 32>}, {pipeline_mode = #tpu.pipeline_mode<synchronous>, transform_indices = @transform_6, window_bounds = array<i64: 1, 32>}, {transform_indices = @transform_7, window_bounds = array<i64: 4, 8, 32>}]} {
    %c0 = arith.constant 0 : index
    %c0_0 = arith.constant 0 : index
    %0 = vector.load %arg5[%c0, %c0_0] : memref<16x32xf32, #tpu.memory_space<vmem>>, vector<16x32xf32>
    %1 = vector.shape_cast %0 : vector<16x32xf32> to vector<1x16x32xf32>
    %2 = vector.broadcast %1 : vector<1x16x32xf32> to vector<4x16x32xf32>
    %c0_1 = arith.constant 0 : index
    %c0_2 = arith.constant 0 : index
    %3 = vector.load %arg6[%c0_1, %c0_2] : memref<24x32xf32, #tpu.memory_space<vmem>>, vector<24x32xf32>
    %4 = vector.shape_cast %3 : vector<24x32xf32> to vector<1x24x32xf32>
    %5 = vector.broadcast %4 : vector<1x24x32xf32> to vector<4x24x32xf32>
    %c0_3 = arith.constant 0 : index
    %c0_4 = arith.constant 0 : index
    %c0_5 = arith.constant 0 : index
    %6 = vector.load %arg1[%c0_3, %c0_4, %c0_5] : memref<4x8x16xf32, #tpu.memory_space<vmem>>, vector<4x8x16xf32>
    "tpu.trace_start"() <{level = 10 : i32, message = "bqd,bdh->bqh"}> : () -> ()
    %cst = arith.constant dense<0.000000e+00> : vector<4x8x32xf32>
    %7 = tpu.matmul %6, %2, %cst {dimension_numbers = #tpu.dot_dimension_numbers<[2], [1], [1], [2], [0, 0, 0, 1, 1, 2], [0], [0]>} : vector<4x8x16xf32>, vector<4x16x32xf32>, vector<4x8x32xf32> -> vector<4x8x32xf32>
    "tpu.trace_stop"() : () -> ()
    %c0_6 = arith.constant 0 : index
    %c0_7 = arith.constant 0 : index
    %c0_8 = arith.constant 0 : index
    %8 = vector.load %arg2[%c0_6, %c0_7, %c0_8] : memref<4x8x24xf32, #tpu.memory_space<vmem>>, vector<4x8x24xf32>
    "tpu.trace_start"() <{level = 10 : i32, message = "bkd,bdh->bkh"}> : () -> ()
    %cst_9 = arith.constant dense<0.000000e+00> : vector<4x8x32xf32>
    %9 = tpu.matmul %8, %5, %cst_9 {dimension_numbers = #tpu.dot_dimension_numbers<[2], [1], [1], [2], [0, 0, 0, 1, 1, 2], [0], [0]>} : vector<4x8x24xf32>, vector<4x24x32xf32>, vector<4x8x32xf32> -> vector<4x8x32xf32>
    "tpu.trace_stop"() : () -> ()
    %10 = vector.shape_cast %7 : vector<4x8x32xf32> to vector<4x8x1x32xf32>
    %11 = vector.shape_cast %9 : vector<4x8x32xf32> to vector<4x1x8x32xf32>
    %12 = vector.broadcast %10 : vector<4x8x1x32xf32> to vector<4x8x8x32xf32>
    %13 = vector.broadcast %11 : vector<4x1x8x32xf32> to vector<4x8x8x32xf32>
    %14 = arith.addf %12, %13 : vector<4x8x8x32xf32>
    %15 = math.tanh %14 : vector<4x8x8x32xf32>
    %c0_10 = arith.constant 0 : index
    %c0_11 = arith.constant 0 : index
    %16 = vector.load %arg7[%c0_10, %c0_11] : memref<1x32xf32, #tpu.memory_space<vmem>>, vector<1x32xf32>
    %17 = vector.shape_cast %16 : vector<1x32xf32> to vector<1x1x1x32xf32>
    %18 = vector.broadcast %17 : vector<1x1x1x32xf32> to vector<4x8x8x32xf32>
    %19 = arith.mulf %15, %18 : vector<4x8x8x32xf32>
    %cst_12 = arith.constant dense<0.000000e+00> : vector<4x8x8xf32>
    %20 = vector.multi_reduction <add>, %19, %cst_12 [3] : vector<4x8x8x32xf32> to vector<4x8x8xf32>
    %21 = tpu.iota {dimensions = array<i32: 2>} : vector<4x8x8xi32>
    %c0_13 = arith.constant 0 : index
    %c0_14 = arith.constant 0 : index
    %c0_15 = arith.constant 0 : index
    %22 = vector.load %arg4[%c0_13, %c0_14, %c0_15] : memref<4x1x1xi32, #tpu.memory_space<vmem>>, vector<4x1x1xi32>
    %23 = vector.broadcast %22 : vector<4x1x1xi32> to vector<4x8x8xi32>
    %24 = arith.cmpi slt, %21, %23 : vector<4x8x8xi32>
    %cst_16 = arith.constant -1.000000e+06 : f32
    %25 = vector.broadcast %cst_16 : f32 to vector<4x8x8xf32>
    %26 = arith.select %24, %20, %25 : vector<4x8x8xi1>, vector<4x8x8xf32>
    %cst_17 = arith.constant dense<0xFF800000> : vector<4x8xf32>
    %27 = vector.multi_reduction <maximumf>, %26, %cst_17 [2] : vector<4x8x8xf32> to vector<4x8xf32>
    %28 = vector.shape_cast %27 : vector<4x8xf32> to vector<4x8x1xf32>
    %29 = vector.broadcast %28 : vector<4x8x1xf32> to vector<4x8x8xf32>
    %30 = arith.subf %26, %29 : vector<4x8x8xf32>
    %31 = math.exp %30 : vector<4x8x8xf32>
    %cst_18 = arith.constant dense<0.000000e+00> : vector<4x8xf32>
    %32 = vector.multi_reduction <add>, %31, %cst_18 [2] : vector<4x8x8xf32> to vector<4x8xf32>
    %33 = vector.shape_cast %32 : vector<4x8xf32> to vector<4x8x1xf32>
    %34 = tpu.reciprocal %33 {approx = true} : vector<4x8x1xf32> -> vector<4x8x1xf32>
    %35 = vector.broadcast %34 : vector<4x8x1xf32> to vector<4x8x8xf32>
    %36 = arith.mulf %31, %35 : vector<4x8x8xf32>
    %c0_19 = arith.constant 0 : index
    %c0_20 = arith.constant 0 : index
    %c0_21 = arith.constant 0 : index
    %37 = vector.load %arg3[%c0_19, %c0_20, %c0_21] : memref<4x8x32xf32, #tpu.memory_space<vmem>>, vector<4x8x32xf32>
    "tpu.trace_start"() <{level = 10 : i32, message = "bqk,bkd->bqd"}> : () -> ()
    %cst_22 = arith.constant dense<0.000000e+00> : vector<4x8x32xf32>
    %38 = tpu.matmul %36, %37, %cst_22 {dimension_numbers = #tpu.dot_dimension_numbers<[2], [1], [1], [2], [0, 0, 0, 1, 1, 2], [0], [0]>} : vector<4x8x8xf32>, vector<4x8x32xf32>, vector<4x8x32xf32> -> vector<4x8x32xf32>
    "tpu.trace_stop"() : () -> ()
    %c0_23 = arith.constant 0 : index
    %c0_24 = arith.constant 0 : index
    %c0_25 = arith.constant 0 : index
    %39 = vector.load %arg8[%c0_23, %c0_24, %c0_25] : memref<4x8x32xf32, #tpu.memory_space<vmem>>, vector<4x8x32xf32>
    tpu.vector_store %arg8[%c0_23, %c0_24, %c0_25], %38 {strides = array<i32>} : memref<4x8x32xf32, #tpu.memory_space<vmem>>, vector<4x8x32xf32>,
    return
  }
  func.func @transform_0(%arg0: i32) -> (i32, i32, i32) {
    %c0_i32 = arith.constant 0 : i32
    %c0_i32_0 = arith.constant 0 : i32
    %c0_i32_1 = arith.constant 0 : i32
    return %arg0, %c0_i32, %c0_i32_0 : i32, i32, i32
  }
  func.func @transform_1(%arg0: i32) -> (i32, i32, i32) {
    %c0_i32 = arith.constant 0 : i32
    %c0_i32_0 = arith.constant 0 : i32
    %c0_i32_1 = arith.constant 0 : i32
    return %arg0, %c0_i32, %c0_i32_0 : i32, i32, i32
  }
  func.func @transform_2(%arg0: i32) -> (i32, i32, i32) {
    %c0_i32 = arith.constant 0 : i32
    %c0_i32_0 = arith.constant 0 : i32
    %c0_i32_1 = arith.constant 0 : i32
    return %arg0, %c0_i32, %c0_i32_0 : i32, i32, i32
  }
  func.func @transform_3(%arg0: i32) -> (i32, i32, i32) {
    %c0_i32 = arith.constant 0 : i32
    %c0_i32_0 = arith.constant 0 : i32
    %c0_i32_1 = arith.constant 0 : i32
    return %arg0, %c0_i32, %c0_i32_0 : i32, i32, i32
  }
  func.func @transform_4(%arg0: i32) -> (i32, i32) {
    %c0_i32 = arith.constant 0 : i32
    %c0_i32_0 = arith.constant 0 : i32
    %c0_i32_1 = arith.constant 0 : i32
    return %c0_i32, %c0_i32_0 : i32, i32
  }
  func.func @transform_5(%arg0: i32) -> (i32, i32) {
    %c0_i32 = arith.constant 0 : i32
    %c0_i32_0 = arith.constant 0 : i32
    %c0_i32_1 = arith.constant 0 : i32
    return %c0_i32, %c0_i32_0 : i32, i32
  }
  func.func @transform_6(%arg0: i32) -> (i32, i32) {
    %c0_i32 = arith.constant 0 : i32
    %c0_i32_0 = arith.constant 0 : i32
    %c0_i32_1 = arith.constant 0 : i32
    return %c0_i32, %c0_i32_0 : i32, i32
  }
  func.func @transform_7(%arg0: i32) -> (i32, i32, i32) {
    %c0_i32 = arith.constant 0 : i32
    %c0_i32_0 = arith.constant 0 : i32
    %c0_i32_1 = arith.constant 0 : i32
    return %arg0, %c0_i32, %c0_i32_0 : i32, i32, i32
  }
}

</mosaic_0001>

<llo_original>
// kernel: tpu_custom_call.1
$region0: #{tpu_custom_call.1}
  #allocation0 [shape = 'u32[]', space=smem, size = 0x4, offset = 0x4, fixed_abs, tag = 'smem constant byte address 0x4 - core index']
  #allocation1 [shape = 'u32[144,128]{1,0:T(1,128)}', space=vmem, size = 0x12000, scoped, tag = 'internal scratch']
  %s0 = inlined_call_operand.hbm [shape: f32[4,8,16], index: 0, kind: input, shape index: {}]
  %s1 = inlined_call_operand.hbm [shape: f32[4,8,24], index: 1, kind: input, shape index: {}]
  %s2 = inlined_call_operand.hbm [shape: f32[4,8,32], index: 2, kind: input, shape index: {}]
  %s3 = inlined_call_operand.vmem [shape: s32[4,1,1], index: 3, kind: input, shape index: {}]
  %s4 = inlined_call_operand.vmem [shape: f32[16,32], index: 4, kind: input, shape index: {}]
  %s5 = inlined_call_operand.hbm [shape: f32[24,32], index: 5, kind: input, shape index: {}]
  %s6 = inlined_call_operand.vmem [shape: f32[1,32], index: 6, kind: input, shape index: {}]
  %s7 = inlined_call_operand.hbm [shape: f32[4,8,32], index: 7, kind: output, shape index: {}]
  %s8 = sld [smem:[#allocation0]]
  $region54: #{tpu_custom_call.1} parent=0
    _
  %s10 = ssub.s32 1, %s8
  %s11 = scalar_select 0, %s10, %s8
  $region1: #{tpu_custom_call.1} parent=0
    #allocation2 [shape = 'u8[16384]{0}', space=vmem, size = 0x4000, scoped, tag = 'input window, operand 0, single buffered']
    #allocation3 [shape = 's32[1]{0}', space=sflag, size = 0x4, scoped, tag = 'scoped memory for tpu_custom_call.1']
    #allocation4 [shape = 's32[1]{0}', space=sflag, size = 0x4, scoped, tag = 'scoped memory for tpu_custom_call.1']
    #allocation5 [shape = 'u8[16384]{0}', space=vmem, size = 0x4000, scoped, tag = 'input window, operand 1, single buffered']
    #allocation6 [shape = 's32[1]{0}', space=sflag, size = 0x4, scoped, tag = 'scoped memory for tpu_custom_call.1']
    #allocation7 [shape = 'u8[16384]{0}', space=vmem, size = 0x4000, scoped, tag = 'input window, operand 2, single buffered']
    #allocation8 [shape = 'u8[12288]{0}', space=vmem, size = 0x3000, scoped, tag = 'input window, operand 5, single buffered']
    #allocation9 [shape = 's32[1]{0}', space=sflag, size = 0x4, scoped, tag = 'scoped memory for tpu_custom_call.1']
    #allocation10 [shape = 'u8[16384]{0}', space=vmem, size = 0x4000, scoped, tag = 'output window, operand 0, single buffered']
    %12 = vsyncpa [#allocation3], 0
    %13 = vsyncpa [#allocation6], 0
    %14 = vsyncpa [#allocation9], 0
    %15 = vsyncpa [#allocation4], 0
    // Predicated region
    $region2: #{tpu_custom_call.1} parent=1 // pred_check
      _
    $region3: #{tpu_custom_call.1} parent=1 // pred_check_branch
      %17 = sbr.rel (0) target = $region5
    $region4: #{tpu_custom_call.1} parent=1 // pred_region
      %s19 = ssub.s32 512, 512
      %20 = vsyncadd [#allocation3], %s19
      %s21 = sshll.u32 [#allocation2], 4
      %s22 = int_to_ptr.vmem [resolvable:$true] %s21
      %27 = dma.hbm_to_vmem [thread:$0]  %s0, 512, %s22, [#allocation3], 128, 128, 8
    $region5: #{tpu_custom_call.1} parent=1 // pred_fallthru
      _
    // Predicated region
    $region6: #{tpu_custom_call.1} parent=1 // pred_check
      _
    $region7: #{tpu_custom_call.1} parent=1 // pred_check_branch
      %29 = sbr.rel (0) target = $region9
    $region8: #{tpu_custom_call.1} parent=1 // pred_region
      %s31 = ssub.s32 512, 512
      %32 = vsyncadd [#allocation6], %s31
      %s33 = sshll.u32 [#allocation5], 4
      %s34 = int_to_ptr.vmem [resolvable:$true] %s33
      %39 = dma.hbm_to_vmem [thread:$0]  %s1, 512, %s34, [#allocation6], 128, 128, 8
    $region9: #{tpu_custom_call.1} parent=1 // pred_fallthru
      _
    // Predicated region
    $region10: #{tpu_custom_call.1} parent=1 // pred_check
      _
    $region11: #{tpu_custom_call.1} parent=1 // pred_check_branch
      %41 = sbr.rel (0) target = $region13
    $region12: #{tpu_custom_call.1} parent=1 // pred_region
      %s43 = ssub.s32 512, 512
      %44 = vsyncadd [#allocation6], %s43
      %s45 = sshll.u32 [#allocation7], 4
      %s46 = int_to_ptr.vmem [resolvable:$true] %s45
      %51 = dma.hbm_to_vmem [thread:$0]  %s2, 512, %s46, [#allocation6], 128, 128, 8
    $region13: #{tpu_custom_call.1} parent=1 // pred_fallthru
      _
    // Predicated region
    $region14: #{tpu_custom_call.1} parent=1 // pred_check
      _
    $region15: #{tpu_custom_call.1} parent=1 // pred_check_branch
      %53 = sbr.rel (0) target = $region17
    $region16: #{tpu_custom_call.1} parent=1 // pred_region
      _
    $region17: #{tpu_custom_call.1} parent=1 // pred_fallthru
      _
    // Predicated region
    $region18: #{tpu_custom_call.1} parent=1 // pred_check
      _
    $region19: #{tpu_custom_call.1} parent=1 // pred_check_branch
      %55 = sbr.rel (0) target = $region21
    $region20: #{tpu_custom_call.1} parent=1 // pred_region
      _
    $region21: #{tpu_custom_call.1} parent=1 // pred_fallthru
      _
    // Predicated region
    $region22: #{tpu_custom_call.1} parent=1 // pred_check
      _
    $region23: #{tpu_custom_call.1} parent=1 // pred_check_branch
      %57 = sbr.rel (0) target = $region25
    $region24: #{tpu_custom_call.1} parent=1 // pred_region
      %s59 = ssub.s32 384, 384
      %60 = vsyncadd [#allocation9], %s59
      %s61 = sshll.u32 [#allocation8], 4
      %s62 = int_to_ptr.vmem [resolvable:$true] %s61
      %67 = dma.hbm_to_vmem [thread:$0]  %s5, 384, %s62, [#allocation9], 128, 128, 8
    $region25: #{tpu_custom_call.1} parent=1 // pred_fallthru
      _
    // Predicated region
    $region26: #{tpu_custom_call.1} parent=1 // pred_check
      _
    $region27: #{tpu_custom_call.1} parent=1 // pred_check_branch
      %69 = sbr.rel (0) target = $region29
    $region28: #{tpu_custom_call.1} parent=1 // pred_region
      _
    $region29: #{tpu_custom_call.1} parent=1 // pred_fallthru
      _
    // Predicated region
    $region30: #{tpu_custom_call.1} parent=1 // pred_check
      _
    $region31: #{tpu_custom_call.1} parent=1 // pred_check_branch
      %71 = sbr.rel (0) target = $region33
    $region32: #{tpu_custom_call.1} parent=1 // pred_region
      %72 = dma.done [#allocation3], 512
    $region33: #{tpu_custom_call.1} parent=1 // pred_fallthru
      _
    // Predicated region
    $region34: #{tpu_custom_call.1} parent=1 // pred_check
      _
    $region35: #{tpu_custom_call.1} parent=1 // pred_check_branch
      %74 = sbr.rel (0) target = $region37
    $region36: #{tpu_custom_call.1} parent=1 // pred_region
      %75 = dma.done [#allocation6], 512
    $region37: #{tpu_custom_call.1} parent=1 // pred_fallthru
      _
    // Predicated region
    $region38: #{tpu_custom_call.1} parent=1 // pred_check
      _
    $region39: #{tpu_custom_call.1} parent=1 // pred_check_branch
      %77 = sbr.rel (0) target = $region41
    $region40: #{tpu_custom_call.1} parent=1 // pred_region
      %78 = dma.done [#allocation6], 512
    $region41: #{tpu_custom_call.1} parent=1 // pred_fallthru
      _
    // Predicated region
    $region42: #{tpu_custom_call.1} parent=1 // pred_check
      _
    $region43: #{tpu_custom_call.1} parent=1 // pred_check_branch
      %80 = sbr.rel (0) target = $region45
    $region44: #{tpu_custom_call.1} parent=1 // pred_region
      %81 = dma.done [#allocation9], 384
    $region45: #{tpu_custom_call.1} parent=1 // pred_fallthru
      _
    %v82 = vld [vmem:[%s4] sm:$0xff]
    %v83 = vld [vmem:[%s4 + $0x8] sm:$0xff]
    %v84 = vld [vmem:[#allocation8] sm:$0xff]
    %v85 = vld [vmem:[#allocation8 + $0x8] sm:$0xff]
    %v86 = vld [vmem:[#allocation8 + $0x10] sm:$0xff]
    %v87 = vld [vmem:[#allocation2] sm:$0xff]
    %v88 = vld [vmem:[#allocation2 + $0x8] sm:$0xff]
    %v89 = vld [vmem:[#allocation2 + $0x10] sm:$0xff]
    %v90 = vld [vmem:[#allocation2 + $0x18] sm:$0xff]
    %vm91 = vcmask 130048
    %v93 = vsel %vm91, %v87, 0
    %95 = vmatprep.subr.mxu0 0.0
    %96 = vmatpush1.msra.mxu0 %v82
    %97 = vmatprep.subr.mxu0 0.0
    %98 = vmatpush1.msra.mxu0 %v83
    %99 = vmatprep.subr.mxu0 0.0
    %100 = vmatpush1.msra.mxu0 0.0
    %101 = vmatprep.subr.mxu0 0.0
    %102 = vmatpush1.msra.mxu0 0.0
    %103 = vmatprep.subr.mxu0 0.0
    %104 = vmatpush1.msra.mxu0 0.0
    %105 = vmatprep.subr.mxu0 0.0
    %106 = vmatpush1.msra.mxu0 0.0
    %107 = vmatprep.subr.mxu0 0.0
    %108 = vmatpush1.msra.mxu0 0.0
    %109 = vmatprep.subr.mxu0 0.0
    %110 = vmatpush1.msra.mxu0 0.0
    %111 = vmatprep.subr.mxu0 0.0
    %112 = vmatpush1.msra.mxu0 0.0
    %113 = vmatprep.subr.mxu0 0.0
    %114 = vmatpush1.msra.mxu0 0.0
    %115 = vmatprep.subr.mxu0 0.0
    %116 = vmatpush1.msra.mxu0 0.0
    %117 = vmatprep.subr.mxu0 0.0
    %118 = vmatpush1.msra.mxu0 0.0
    %119 = vmatprep.subr.mxu0 0.0
    %120 = vmatpush1.msra.mxu0 0.0
    %121 = vmatprep.subr.mxu0 0.0
    %122 = vmatpush1.msra.mxu0 0.0
    %123 = vmatprep.subr.mxu0 0.0
    %124 = vmatpush1.msra.mxu0 0.0
    %125 = vmatprep.subr.mxu0 0.0
    %126 = vmatpush1.msra.mxu0 0.0
    %127 = vmatprep.subr.mxu0 0.0
    %128 = vmatpush1.msra.mxu0 0.0
    %129 = vmatprep.subr.mxu0 0.0
    %130 = vmatpush1.msra.mxu0 0.0
    %131 = vmatprep.subr.mxu0 0.0
    %132 = vmatpush1.msra.mxu0 0.0
    %133 = vmatprep.subr.mxu0 0.0
    %134 = vmatpush1.msra.mxu0 0.0
    %135 = vmatprep.subr.mxu0 0.0
    %136 = vmatpush1.msra.mxu0 0.0
    %137 = vmatprep.subr.mxu0 0.0
    %138 = vmatpush1.msra.mxu0 0.0
    %139 = vmatprep.subr.mxu0 0.0
    %140 = vmatpush1.msra.mxu0 0.0
    %141 = vmatprep.subr.mxu0 0.0
    %142 = vmatpush1.msra.mxu0 0.0
    %143 = vmatprep.subr.mxu0 0.0
    %144 = vmatpush1.msra.mxu0 0.0
    %145 = vmatprep.subr.mxu0 0.0
    %146 = vmatpush1.msra.mxu0 0.0
    %147 = vmatprep.subr.mxu0 0.0
    %148 = vmatpush1.msra.mxu0 0.0
    %149 = vmatprep.subr.mxu0 0.0
    %150 = vmatpush1.msra.mxu0 0.0
    %151 = vmatprep.subr.mxu0 0.0
    %152 = vmatpush1.msra.mxu0 0.0
    %153 = vmatprep.subr.mxu0 0.0
    %154 = vmatpush1.msra.mxu0 0.0
    %155 = vmatprep.subr.mxu0 0.0
    %156 = vmatpush1.msra.mxu0 0.0
    %157 = vmatprep.subr.mxu0 0.0
    %158 = vmatpush1.msra.mxu0 0.0
    %159 = vmatprep.mubr.f32.mxu0 0.0
    %160 = vmatmul.mubr.f32.gmra.mrb[0].mxu0 %v93
    %v161 = vpop.f32.mrb[0].mxu0
    %v162 = vadd.f32 0.0, %v161
    %v163 = vpop.f32.mrb[0].mxu0
    %164 = vdwg.mxu0
    %v166 = vsel %vm91, %v88, 0
    %168 = vmatprep.subr.mxu0 0.0
    %169 = vmatpush1.msra.mxu0 %v82
    %170 = vmatprep.subr.mxu0 0.0
    %171 = vmatpush1.msra.mxu0 %v83
    %172 = vmatprep.subr.mxu0 0.0
    %173 = vmatpush1.msra.mxu0 0.0
    %174 = vmatprep.subr.mxu0 0.0
    %175 = vmatpush1.msra.mxu0 0.0
    %176 = vmatprep.subr.mxu0 0.0
    %177 = vmatpush1.msra.mxu0 0.0
    %178 = vmatprep.subr.mxu0 0.0
    %179 = vmatpush1.msra.mxu0 0.0
    %180 = vmatprep.subr.mxu0 0.0
    %181 = vmatpush1.msra.mxu0 0.0
    %182 = vmatprep.subr.mxu0 0.0
    %183 = vmatpush1.msra.mxu0 0.0
    %184 = vmatprep.subr.mxu0 0.0
    %185 = vmatpush1.msra.mxu0 0.0
    %186 = vmatprep.subr.mxu0 0.0
    %187 = vmatpush1.msra.mxu0 0.0
    %188 = vmatprep.subr.mxu0 0.0
    %189 = vmatpush1.msra.mxu0 0.0
    %190 = vmatprep.subr.mxu0 0.0
    %191 = vmatpush1.msra.mxu0 0.0
    %192 = vmatprep.subr.mxu0 0.0
    %193 = vmatpush1.msra.mxu0 0.0
    %194 = vmatprep.subr.mxu0 0.0
    %195 = vmatpush1.msra.mxu0 0.0
    %196 = vmatprep.subr.mxu0 0.0
    %197 = vmatpush1.msra.mxu0 0.0
    %198 = vmatprep.subr.mxu0 0.0
    %199 = vmatpush1.msra.mxu0 0.0
    %200 = vmatprep.subr.mxu0 0.0
    %201 = vmatpush1.msra.mxu0 0.0
    %202 = vmatprep.subr.mxu0 0.0
    %203 = vmatpush1.msra.mxu0 0.0
    %204 = vmatprep.subr.mxu0 0.0
    %205 = vmatpush1.msra.mxu0 0.0
    %206 = vmatprep.subr.mxu0 0.0
    %207 = vmatpush1.msra.mxu0 0.0
    %208 = vmatprep.subr.mxu0 0.0
    %209 = vmatpush1.msra.mxu0 0.0
    %210 = vmatprep.subr.mxu0 0.0
    %211 = vmatpush1.msra.mxu0 0.0
    %212 = vmatprep.subr.mxu0 0.0
    %213 = vmatpush1.msra.mxu0 0.0
    %214 = vmatprep.subr.mxu0 0.0
    %215 = vmatpush1.msra.mxu0 0.0
    %216 = vmatprep.subr.mxu0 0.0
    %217 = vmatpush1.msra.mxu0 0.0
    %218 = vmatprep.subr.mxu0 0.0
    %219 = vmatpush1.msra.mxu0 0.0
    %220 = vmatprep.subr.mxu0 0.0
    %221 = vmatpush1.msra.mxu0 0.0
    %222 = vmatprep.subr.mxu0 0.0
    %223 = vmatpush1.msra.mxu0 0.0
    %224 = vmatprep.subr.mxu0 0.0
    %225 = vmatpush1.msra.mxu0 0.0
    %226 = vmatprep.subr.mxu0 0.0
    %227 = vmatpush1.msra.mxu0 0.0
    %228 = vmatprep.subr.mxu0 0.0
    %229 = vmatpush1.msra.mxu0 0.0
    %230 = vmatprep.subr.mxu0 0.0
    %231 = vmatpush1.msra.mxu0 0.0
    %232 = vmatprep.mubr.f32.mxu0 0.0
    %233 = vmatmul.mubr.f32.gmra.mrb[0].mxu0 %v166
    %v234 = vpop.f32.mrb[0].mxu0
    %v235 = vadd.f32 0.0, %v234
    %v236 = vpop.f32.mrb[0].mxu0
    %237 = vdwg.mxu0
    %v239 = vsel %vm91, %v89, 0
    %241 = vmatprep.subr.mxu0 0.0
    %242 = vmatpush1.msra.mxu0 %v82
    %243 = vmatprep.subr.mxu0 0.0
    %244 = vmatpush1.msra.mxu0 %v83
    %245 = vmatprep.subr.mxu0 0.0
    %246 = vmatpush1.msra.mxu0 0.0
    %247 = vmatprep.subr.mxu0 0.0
    %248 = vmatpush1.msra.mxu0 0.0
    %249 = vmatprep.subr.mxu0 0.0
    %250 = vmatpush1.msra.mxu0 0.0
    %251 = vmatprep.subr.mxu0 0.0
    %252 = vmatpush1.msra.mxu0 0.0
    %253 = vmatprep.subr.mxu0 0.0
    %254 = vmatpush1.msra.mxu0 0.0
    %255 = vmatprep.subr.mxu0 0.0
    %256 = vmatpush1.msra.mxu0 0.0
    %257 = vmatprep.subr.mxu0 0.0
    %258 = vmatpush1.msra.mxu0 0.0
    %259 = vmatprep.subr.mxu0 0.0
    %260 = vmatpush1.msra.mxu0 0.0
    %261 = vmatprep.subr.mxu0 0.0
    %262 = vmatpush1.msra.mxu0 0.0
    %263 = vmatprep.subr.mxu0 0.0
    %264 = vmatpush1.msra.mxu0 0.0
    %265 = vmatprep.subr.mxu0 0.0
    %266 = vmatpush1.msra.mxu0 0.0
    %267 = vmatprep.subr.mxu0 0.0
    %268 = vmatpush1.msra.mxu0 0.0
    %269 = vmatprep.subr.mxu0 0.0
    %270 = vmatpush1.msra.mxu0 0.0
    %271 = vmatprep.subr.mxu0 0.0
    %272 = vmatpush1.msra.mxu0 0.0
    %273 = vmatprep.subr.mxu0 0.0
    %274 = vmatpush1.msra.mxu0 0.0
    %275 = vmatprep.subr.mxu0 0.0
    %276 = vmatpush1.msra.mxu0 0.0
    %277 = vmatprep.subr.mxu0 0.0
    %278 = vmatpush1.msra.mxu0 0.0
    %279 = vmatprep.subr.mxu0 0.0
    %280 = vmatpush1.msra.mxu0 0.0
    %281 = vmatprep.subr.mxu0 0.0
    %282 = vmatpush1.msra.mxu0 0.0
    %283 = vmatprep.subr.mxu0 0.0
    %284 = vmatpush1.msra.mxu0 0.0
    %285 = vmatprep.subr.mxu0 0.0
    %286 = vmatpush1.msra.mxu0 0.0
    %287 = vmatprep.subr.mxu0 0.0
    %288 = vmatpush1.msra.mxu0 0.0
    %289 = vmatprep.subr.mxu0 0.0
    %290 = vmatpush1.msra.mxu0 0.0
    %291 = vmatprep.subr.mxu0 0.0
    %292 = vmatpush1.msra.mxu0 0.0
    %293 = vmatprep.subr.mxu0 0.0
    %294 = vmatpush1.msra.mxu0 0.0
    %295 = vmatprep.subr.mxu0 0.0
    %296 = vmatpush1.msra.mxu0 0.0
    %297 = vmatprep.subr.mxu0 0.0
    %298 = vmatpush1.msra.mxu0 0.0
    %299 = vmatprep.subr.mxu0 0.0
    %300 = vmatpush1.msra.mxu0 0.0
    %301 = vmatprep.subr.mxu0 0.0
    %302 = vmatpush1.msra.mxu0 0.0
    %303 = vmatprep.subr.mxu0 0.0
    %304 = vmatpush1.msra.mxu0 0.0
    %305 = vmatprep.mubr.f32.mxu0 0.0
    %306 = vmatmul.mubr.f32.gmra.mrb[0].mxu0 %v239
    %v307 = vpop.f32.mrb[0].mxu0
    %v308 = vadd.f32 0.0, %v307
    %v309 = vpop.f32.mrb[0].mxu0
    %310 = vdwg.mxu0
    %v312 = vsel %vm91, %v90, 0
    %314 = vmatprep.subr.mxu0 0.0
    %315 = vmatpush1.msra.mxu0 %v82
    %316 = vmatprep.subr.mxu0 0.0
    %317 = vmatpush1.msra.mxu0 %v83
    %318 = vmatprep.subr.mxu0 0.0
    %319 = vmatpush1.msra.mxu0 0.0
    %320 = vmatprep.subr.mxu0 0.0
    %321 = vmatpush1.msra.mxu0 0.0
    %322 = vmatprep.subr.mxu0 0.0
    %323 = vmatpush1.msra.mxu0 0.0
    %324 = vmatprep.subr.mxu0 0.0
    %325 = vmatpush1.msra.mxu0 0.0
    %326 = vmatprep.subr.mxu0 0.0
    %327 = vmatpush1.msra.mxu0 0.0
    %328 = vmatprep.subr.mxu0 0.0
    %329 = vmatpush1.msra.mxu0 0.0
    %330 = vmatprep.subr.mxu0 0.0
    %331 = vmatpush1.msra.mxu0 0.0
    %332 = vmatprep.subr.mxu0 0.0
    %333 = vmatpush1.msra.mxu0 0.0
    %334 = vmatprep.subr.mxu0 0.0
    %335 = vmatpush1.msra.mxu0 0.0
    %336 = vmatprep.subr.mxu0 0.0
    %337 = vmatpush1.msra.mxu0 0.0
    %338 = vmatprep.subr.mxu0 0.0
    %339 = vmatpush1.msra.mxu0 0.0
    %340 = vmatprep.subr.mxu0 0.0
    %341 = vmatpush1.msra.mxu0 0.0
    %342 = vmatprep.subr.mxu0 0.0
    %343 = vmatpush1.msra.mxu0 0.0
    %344 = vmatprep.subr.mxu0 0.0
    %345 = vmatpush1.msra.mxu0 0.0
    %346 = vmatprep.subr.mxu0 0.0
    %347 = vmatpush1.msra.mxu0 0.0
    %348 = vmatprep.subr.mxu0 0.0
    %349 = vmatpush1.msra.mxu0 0.0
    %350 = vmatprep.subr.mxu0 0.0
    %351 = vmatpush1.msra.mxu0 0.0
    %352 = vmatprep.subr.mxu0 0.0
    %353 = vmatpush1.msra.mxu0 0.0
    %354 = vmatprep.subr.mxu0 0.0
    %355 = vmatpush1.msra.mxu0 0.0
    %356 = vmatprep.subr.mxu0 0.0
    %357 = vmatpush1.msra.mxu0 0.0
    %358 = vmatprep.subr.mxu0 0.0
    %359 = vmatpush1.msra.mxu0 0.0
    %360 = vmatprep.subr.mxu0 0.0
    %361 = vmatpush1.msra.mxu0 0.0
    %362 = vmatprep.subr.mxu0 0.0
    %363 = vmatpush1.msra.mxu0 0.0
    %364 = vmatprep.subr.mxu0 0.0
    %365 = vmatpush1.msra.mxu0 0.0
    %366 = vmatprep.subr.mxu0 0.0
    %367 = vmatpush1.msra.mxu0 0.0
    %368 = vmatprep.subr.mxu0 0.0
    %369 = vmatpush1.msra.mxu0 0.0
    %370 = vmatprep.subr.mxu0 0.0
    %371 = vmatpush1.msra.mxu0 0.0
    %372 = vmatprep.subr.mxu0 0.0
    %373 = vmatpush1.msra.mxu0 0.0
    %374 = vmatprep.subr.mxu0 0.0
    %375 = vmatpush1.msra.mxu0 0.0
    %376 = vmatprep.subr.mxu0 0.0
    %377 = vmatpush1.msra.mxu0 0.0
    %378 = vmatprep.mubr.f32.mxu0 0.0
    %379 = vmatmul.mubr.f32.gmra.mrb[0].mxu0 %v312
    %v380 = vpop.f32.mrb[0].mxu0
    %v381 = vadd.f32 0.0, %v380
    %v382 = vpop.f32.mrb[0].mxu0
    %383 = vdwg.mxu0
    %v384 = vld [vmem:[#allocation5] sm:$0xff]
    %v385 = vld [vmem:[#allocation5 + $0x8] sm:$0xff]
    %v386 = vld [vmem:[#allocation5 + $0x10] sm:$0xff]
    %v387 = vld [vmem:[#allocation5 + $0x18] sm:$0xff]
    %vm388 = vcmask 195584
    %v390 = vsel %vm388, %v384, 0
    %392 = vmatprep.subr.mxu0 0.0
    %393 = vmatpush1.msra.mxu0 %v84
    %394 = vmatprep.subr.mxu0 0.0
    %395 = vmatpush1.msra.mxu0 %v85
    %396 = vmatprep.subr.mxu0 0.0
    %397 = vmatpush1.msra.mxu0 %v86
    %398 = vmatprep.subr.mxu0 0.0
    %399 = vmatpush1.msra.mxu0 0.0
    %400 = vmatprep.subr.mxu0 0.0
    %401 = vmatpush1.msra.mxu0 0.0
    %402 = vmatprep.subr.mxu0 0.0
    %403 = vmatpush1.msra.mxu0 0.0
    %404 = vmatprep.subr.mxu0 0.0
    %405 = vmatpush1.msra.mxu0 0.0
    %406 = vmatprep.subr.mxu0 0.0
    %407 = vmatpush1.msra.mxu0 0.0
    %408 = vmatprep.subr.mxu0 0.0
    %409 = vmatpush1.msra.mxu0 0.0
    %410 = vmatprep.subr.mxu0 0.0
    %411 = vmatpush1.msra.mxu0 0.0
    %412 = vmatprep.subr.mxu0 0.0
    %413 = vmatpush1.msra.mxu0 0.0
    %414 = vmatprep.subr.mxu0 0.0
    %415 = vmatpush1.msra.mxu0 0.0
    %416 = vmatprep.subr.mxu0 0.0
    %417 = vmatpush1.msra.mxu0 0.0
    %418 = vmatprep.subr.mxu0 0.0
    %419 = vmatpush1.msra.mxu0 0.0
    %420 = vmatprep.subr.mxu0 0.0
    %421 = vmatpush1.msra.mxu0 0.0
    %422 = vmatprep.subr.mxu0 0.0
    %423 = vmatpush1.msra.mxu0 0.0
    %424 = vmatprep.subr.mxu0 0.0
    %425 = vmatpush1.msra.mxu0 0.0
    %426 = vmatprep.subr.mxu0 0.0
    %427 = vmatpush1.msra.mxu0 0.0
    %428 = vmatprep.subr.mxu0 0.0
    %429 = vmatpush1.msra.mxu0 0.0
    %430 = vmatprep.subr.mxu0 0.0
    %431 = vmatpush1.msra.mxu0 0.0
    %432 = vmatprep.subr.mxu0 0.0
    %433 = vmatpush1.msra.mxu0 0.0
    %434 = vmatprep.subr.mxu0 0.0
    %435 = vmatpush1.msra.mxu0 0.0
    %436 = vmatprep.subr.mxu0 0.0
    %437 = vmatpush1.msra.mxu0 0.0
    %438 = vmatprep.subr.mxu0 0.0
    %439 = vmatpush1.msra.mxu0 0.0
    %440 = vmatprep.subr.mxu0 0.0
    %441 = vmatpush1.msra.mxu0 0.0
    %442 = vmatprep.subr.mxu0 0.0
    %443 = vmatpush1.msra.mxu0 0.0
    %444 = vmatprep.subr.mxu0 0.0
    %445 = vmatpush1.msra.mxu0 0.0
    %446 = vmatprep.subr.mxu0 0.0
    %447 = vmatpush1.msra.mxu0 0.0
    %448 = vmatprep.subr.mxu0 0.0
    %449 = vmatpush1.msra.mxu0 0.0
    %450 = vmatprep.subr.mxu0 0.0
    %451 = vmatpush1.msra.mxu0 0.0
    %452 = vmatprep.subr.mxu0 0.0
    %453 = vmatpush1.msra.mxu0 0.0
    %454 = vmatprep.subr.mxu0 0.0
    %455 = vmatpush1.msra.mxu0 0.0
    %456 = vmatprep.mubr.f32.mxu0 0.0
    %457 = vmatmul.mubr.f32.gmra.mrb[0].mxu0 %v390
    %v458 = vpop.f32.mrb[0].mxu0
    %v459 = vadd.f32 0.0, %v458
    %v460 = vpop.f32.mrb[0].mxu0
    %461 = vdwg.mxu0
    %v463 = vsel %vm388, %v385, 0
    %465 = vmatprep.subr.mxu0 0.0
    %466 = vmatpush1.msra.mxu0 %v84
    %467 = vmatprep.subr.mxu0 0.0
    %468 = vmatpush1.msra.mxu0 %v85
    %469 = vmatprep.subr.mxu0 0.0
    %470 = vmatpush1.msra.mxu0 %v86
    %471 = vmatprep.subr.mxu0 0.0
    %472 = vmatpush1.msra.mxu0 0.0
    %473 = vmatprep.subr.mxu0 0.0
    %474 = vmatpush1.msra.mxu0 0.0
    %475 = vmatprep.subr.mxu0 0.0
    %476 = vmatpush1.msra.mxu0 0.0
    %477 = vmatprep.subr.mxu0 0.0
    %478 = vmatpush1.msra.mxu0 0.0
    %479 = vmatprep.subr.mxu0 0.0
    %480 = vmatpush1.msra.mxu0 0.0
    %481 = vmatprep.subr.mxu0 0.0
    %482 = vmatpush1.msra.mxu0 0.0
    %483 = vmatprep.subr.mxu0 0.0
    %484 = vmatpush1.msra.mxu0 0.0
    %485 = vmatprep.subr.mxu0 0.0
    %486 = vmatpush1.msra.mxu0 0.0
    %487 = vmatprep.subr.mxu0 0.0
    %488 = vmatpush1.msra.mxu0 0.0
    %489 = vmatprep.subr.mxu0 0.0
    %490 = vmatpush1.msra.mxu0 0.0
    %491 = vmatprep.subr.mxu0 0.0
    %492 = vmatpush1.msra.mxu0 0.0
    %493 = vmatprep.subr.mxu0 0.0
    %494 = vmatpush1.msra.mxu0 0.0
    %495 = vmatprep.subr.mxu0 0.0
    %496 = vmatpush1.msra.mxu0 0.0
    %497 = vmatprep.subr.mxu0 0.0
    %498 = vmatpush1.msra.mxu0 0.0
    %499 = vmatprep.subr.mxu0 0.0
    %500 = vmatpush1.msra.mxu0 0.0
    %501 = vmatprep.subr.mxu0 0.0
    %502 = vmatpush1.msra.mxu0 0.0
    %503 = vmatprep.subr.mxu0 0.0
    %504 = vmatpush1.msra.mxu0 0.0
    %505 = vmatprep.subr.mxu0 0.0
    %506 = vmatpush1.msra.mxu0 0.0
    %507 = vmatprep.subr.mxu0 0.0
    %508 = vmatpush1.msra.mxu0 0.0
    %509 = vmatprep.subr.mxu0 0.0
    %510 = vmatpush1.msra.mxu0 0.0
    %511 = vmatprep.subr.mxu0 0.0
    %512 = vmatpush1.msra.mxu0 0.0
    %513 = vmatprep.subr.mxu0 0.0
    %514 = vmatpush1.msra.mxu0 0.0
    %515 = vmatprep.subr.mxu0 0.0
    %516 = vmatpush1.msra.mxu0 0.0
    %517 = vmatprep.subr.mxu0 0.0
    %518 = vmatpush1.msra.mxu0 0.0
    %519 = vmatprep.subr.mxu0 0.0
    %520 = vmatpush1.msra.mxu0 0.0
    %521 = vmatprep.subr.mxu0 0.0
    %522 = vmatpush1.msra.mxu0 0.0
    %523 = vmatprep.subr.mxu0 0.0
    %524 = vmatpush1.msra.mxu0 0.0
    %525 = vmatprep.subr.mxu0 0.0
    %526 = vmatpush1.msra.mxu0 0.0
    %527 = vmatprep.subr.mxu0 0.0
    %528 = vmatpush1.msra.mxu0 0.0
    %529 = vmatprep.mubr.f32.mxu0 0.0
    %530 = vmatmul.mubr.f32.gmra.mrb[0].mxu0 %v463
    %v531 = vpop.f32.mrb[0].mxu0
    %v532 = vadd.f32 0.0, %v531
    %v533 = vpop.f32.mrb[0].mxu0
    %534 = vdwg.mxu0
    %v536 = vsel %vm388, %v386, 0
    %538 = vmatprep.subr.mxu0 0.0
    %539 = vmatpush1.msra.mxu0 %v84
    %540 = vmatprep.subr.mxu0 0.0
    %541 = vmatpush1.msra.mxu0 %v85
    %542 = vmatprep.subr.mxu0 0.0
    %543 = vmatpush1.msra.mxu0 %v86
    %544 = vmatprep.subr.mxu0 0.0
    %545 = vmatpush1.msra.mxu0 0.0
    %546 = vmatprep.subr.mxu0 0.0
    %547 = vmatpush1.msra.mxu0 0.0
    %548 = vmatprep.subr.mxu0 0.0
    %549 = vmatpush1.msra.mxu0 0.0
    %550 = vmatprep.subr.mxu0 0.0
    %551 = vmatpush1.msra.mxu0 0.0
    %552 = vmatprep.subr.mxu0 0.0
    %553 = vmatpush1.msra.mxu0 0.0
    %554 = vmatprep.subr.mxu0 0.0
    %555 = vmatpush1.msra.mxu0 0.0
    %556 = vmatprep.subr.mxu0 0.0
    %557 = vmatpush1.msra.mxu0 0.0
    %558 = vmatprep.subr.mxu0 0.0
    %559 = vmatpush1.msra.mxu0 0.0
    %560 = vmatprep.subr.mxu0 0.0
    %561 = vmatpush1.msra.mxu0 0.0
    %562 = vmatprep.subr.mxu0 0.0
    %563 = vmatpush1.msra.mxu0 0.0
    %564 = vmatprep.subr.mxu0 0.0
    %565 = vmatpush1.msra.mxu0 0.0
    %566 = vmatprep.subr.mxu0 0.0
    %567 = vmatpush1.msra.mxu0 0.0
    %568 = vmatprep.subr.mxu0 0.0
    %569 = vmatpush1.msra.mxu0 0.0
    %570 = vmatprep.subr.mxu0 0.0
    %571 = vmatpush1.msra.mxu0 0.0
    %572 = vmatprep.subr.mxu0 0.0
    %573 = vmatpush1.msra.mxu0 0.0
    %574 = vmatprep.subr.mxu0 0.0
    %575 = vmatpush1.msra.mxu0 0.0
    %576 = vmatprep.subr.mxu0 0.0
    %577 = vmatpush1.msra.mxu0 0.0
    %578 = vmatprep.subr.mxu0 0.0
    %579 = vmatpush1.msra.mxu0 0.0
    %580 = vmatprep.subr.mxu0 0.0
    %581 = vmatpush1.msra.mxu0 0.0
    %582 = vmatprep.subr.mxu0 0.0
    %583 = vmatpush1.msra.mxu0 0.0
    %584 = vmatprep.subr.mxu0 0.0
    %585 = vmatpush1.msra.mxu0 0.0
    %586 = vmatprep.subr.mxu0 0.0
    %587 = vmatpush1.msra.mxu0 0.0
    %588 = vmatprep.subr.mxu0 0.0
    %589 = vmatpush1.msra.mxu0 0.0
    %590 = vmatprep.subr.mxu0 0.0
    %591 = vmatpush1.msra.mxu0 0.0
    %592 = vmatprep.subr.mxu0 0.0
    %593 = vmatpush1.msra.mxu0 0.0
    %594 = vmatprep.subr.mxu0 0.0
    %595 = vmatpush1.msra.mxu0 0.0
    %596 = vmatprep.subr.mxu0 0.0
    %597 = vmatpush1.msra.mxu0 0.0
    %598 = vmatprep.subr.mxu0 0.0
    %599 = vmatpush1.msra.mxu0 0.0
    %600 = vmatprep.subr.mxu0 0.0
    %601 = vmatpush1.msra.mxu0 0.0
    %602 = vmatprep.mubr.f32.mxu0 0.0
    %603 = vmatmul.mubr.f32.gmra.mrb[0].mxu0 %v536
    %v604 = vpop.f32.mrb[0].mxu0
    %v605 = vadd.f32 0.0, %v604
    %v606 = vpop.f32.mrb[0].mxu0
    %607 = vdwg.mxu0
    %v609 = vsel %vm388, %v387, 0
    %611 = vmatprep.subr.mxu0 0.0
    %612 = vmatpush1.msra.mxu0 %v84
    %613 = vmatprep.subr.mxu0 0.0
    %614 = vmatpush1.msra.mxu0 %v85
    %615 = vmatprep.subr.mxu0 0.0
    %616 = vmatpush1.msra.mxu0 %v86
    %617 = vmatprep.subr.mxu0 0.0
    %618 = vmatpush1.msra.mxu0 0.0
    %619 = vmatprep.subr.mxu0 0.0
    %620 = vmatpush1.msra.mxu0 0.0
    %621 = vmatprep.subr.mxu0 0.0
    %622 = vmatpush1.msra.mxu0 0.0
    %623 = vmatprep.subr.mxu0 0.0
    %624 = vmatpush1.msra.mxu0 0.0
    %625 = vmatprep.subr.mxu0 0.0
    %626 = vmatpush1.msra.mxu0 0.0
    %627 = vmatprep.subr.mxu0 0.0
    %628 = vmatpush1.msra.mxu0 0.0
    %629 = vmatprep.subr.mxu0 0.0
    %630 = vmatpush1.msra.mxu0 0.0
    %631 = vmatprep.subr.mxu0 0.0
    %632 = vmatpush1.msra.mxu0 0.0
    %633 = vmatprep.subr.mxu0 0.0
    %634 = vmatpush1.msra.mxu0 0.0
    %635 = vmatprep.subr.mxu0 0.0
    %636 = vmatpush1.msra.mxu0 0.0
    %637 = vmatprep.subr.mxu0 0.0
    %638 = vmatpush1.msra.mxu0 0.0
    %639 = vmatprep.subr.mxu0 0.0
    %640 = vmatpush1.msra.mxu0 0.0
    %641 = vmatprep.subr.mxu0 0.0
    %642 = vmatpush1.msra.mxu0 0.0
    %643 = vmatprep.subr.mxu0 0.0
    %644 = vmatpush1.msra.mxu0 0.0
    %645 = vmatprep.subr.mxu0 0.0
    %646 = vmatpush1.msra.mxu0 0.0
    %647 = vmatprep.subr.mxu0 0.0
    %648 = vmatpush1.msra.mxu0 0.0
    %649 = vmatprep.subr.mxu0 0.0
    %650 = vmatpush1.msra.mxu0 0.0
    %651 = vmatprep.subr.mxu0 0.0
    %652 = vmatpush1.msra.mxu0 0.0
    %653 = vmatprep.subr.mxu0 0.0
    %654 = vmatpush1.msra.mxu0 0.0
    %655 = vmatprep.subr.mxu0 0.0
    %656 = vmatpush1.msra.mxu0 0.0
    %657 = vmatprep.subr.mxu0 0.0
    %658 = vmatpush1.msra.mxu0 0.0
    %659 = vmatprep.subr.mxu0 0.0
    %660 = vmatpush1.msra.mxu0 0.0
    %661 = vmatprep.subr.mxu0 0.0
    %662 = vmatpush1.msra.mxu0 0.0
    %663 = vmatprep.subr.mxu0 0.0
    %664 = vmatpush1.msra.mxu0 0.0
    %665 = vmatprep.subr.mxu0 0.0
    %666 = vmatpush1.msra.mxu0 0.0
    %667 = vmatprep.subr.mxu0 0.0
    %668 = vmatpush1.msra.mxu0 0.0
    %669 = vmatprep.subr.mxu0 0.0
    %670 = vmatpush1.msra.mxu0 0.0
    %671 = vmatprep.subr.mxu0 0.0
    %672 = vmatpush1.msra.mxu0 0.0
    %673 = vmatprep.subr.mxu0 0.0
    %674 = vmatpush1.msra.mxu0 0.0
    %675 = vmatprep.mubr.f32.mxu0 0.0
    %676 = vmatmul.mubr.f32.gmra.mrb[0].mxu0 %v609
    %v677 = vpop.f32.mrb[0].mxu0
    %v678 = vadd.f32 0.0, %v677
    %v679 = vpop.f32.mrb[0].mxu0
    %680 = vdwg.mxu0
    %v685 = vcombine.high %v162, %v162
    %v687 = vunpack.c.l.s4 1966171168
    %v688 = vunpack.c.0.s8 %v687
    %v689 = vlaneseq
    %v690 = vshrl.u32 %v689, 7
    %v691 = vsub.s32 %v688, %v690
    %v692 = vrot.slane %v162, %v691
    %v694 = vunpack.c.l.s4 1966171168
    %v695 = vunpack.c.0.s8 %v694
    %v696 = vlaneseq
    %v697 = vshrl.u32 %v696, 7
    %v698 = vsub.s32 %v695, %v697
    %v699 = vrot.slane %v685, %v698
    %v700 = vcombine.high %v692, %v692
    %v701 = vcombine.high %v699, %v699
    %v703 = vunpack.c.l.s4 1966171168
    %v704 = vunpack.c.0.s8 %v703
    %v705 = vlaneseq
    %v706 = vshrl.u32 %v705, 7
    %v707 = vsub.s32 %v704, %v706
    %v708 = vrot.slane %v692, %v707
    %v710 = vunpack.c.l.s4 1966171168
    %v711 = vunpack.c.0.s8 %v710
    %v712 = vlaneseq
    %v713 = vshrl.u32 %v712, 7
    %v714 = vsub.s32 %v711, %v713
    %v715 = vrot.slane %v699, %v714
    %v717 = vunpack.c.l.s4 1966171168
    %v718 = vunpack.c.0.s8 %v717
    %v719 = vlaneseq
    %v720 = vshrl.u32 %v719, 7
    %v721 = vsub.s32 %v718, %v720
    %v722 = vrot.slane %v700, %v721
    %v724 = vunpack.c.l.s4 1966171168
    %v725 = vunpack.c.0.s8 %v724
    %v726 = vlaneseq
    %v727 = vshrl.u32 %v726, 7
    %v728 = vsub.s32 %v725, %v727
    %v729 = vrot.slane %v701, %v728
    %v730 = vcombine.high %v708, %v708
    %v731 = vcombine.high %v715, %v715
    %v732 = vcombine.high %v722, %v722
    %v733 = vcombine.high %v729, %v729
    %v734 = vcombine.high %v235, %v235
    %v736 = vunpack.c.l.s4 1966171168
    %v737 = vunpack.c.0.s8 %v736
    %v738 = vlaneseq
    %v739 = vshrl.u32 %v738, 7
    %v740 = vsub.s32 %v737, %v739
    %v741 = vrot.slane %v235, %v740
    %v743 = vunpack.c.l.s4 1966171168
    %v744 = vunpack.c.0.s8 %v743
    %v745 = vlaneseq
    %v746 = vshrl.u32 %v745, 7
    %v747 = vsub.s32 %v744, %v746
    %v748 = vrot.slane %v734, %v747
    %v749 = vcombine.high %v741, %v741
    %v750 = vcombine.high %v748, %v748
    %v752 = vunpack.c.l.s4 1966171168
    %v753 = vunpack.c.0.s8 %v752
    %v754 = vlaneseq
    %v755 = vshrl.u32 %v754, 7
    %v756 = vsub.s32 %v753, %v755
    %v757 = vrot.slane %v741, %v756
    %v759 = vunpack.c.l.s4 1966171168
    %v760 = vunpack.c.0.s8 %v759
    %v761 = vlaneseq
    %v762 = vshrl.u32 %v761, 7
    %v763 = vsub.s32 %v760, %v762
    %v764 = vrot.slane %v748, %v763
    %v766 = vunpack.c.l.s4 1966171168
    %v767 = vunpack.c.0.s8 %v766
    %v768 = vlaneseq
    %v769 = vshrl.u32 %v768, 7
    %v770 = vsub.s32 %v767, %v769
    %v771 = vrot.slane %v749, %v770
    %v773 = vunpack.c.l.s4 1966171168
    %v774 = vunpack.c.0.s8 %v773
    %v775 = vlaneseq
    %v776 = vshrl.u32 %v775, 7
    %v777 = vsub.s32 %v774, %v776
    %v778 = vrot.slane %v750, %v777
    %v779 = vcombine.high %v757, %v757
    %v780 = vcombine.high %v764, %v764
    %v781 = vcombine.high %v771, %v771
    %v782 = vcombine.high %v778, %v778
    %v783 = vcombine.high %v308, %v308
    %v785 = vunpack.c.l.s4 1966171168
    %v786 = vunpack.c.0.s8 %v785
    %v787 = vlaneseq
    %v788 = vshrl.u32 %v787, 7
    %v789 = vsub.s32 %v786, %v788
    %v790 = vrot.slane %v308, %v789
    %v792 = vunpack.c.l.s4 1966171168
    %v793 = vunpack.c.0.s8 %v792
    %v794 = vlaneseq
    %v795 = vshrl.u32 %v794, 7
    %v796 = vsub.s32 %v793, %v795
    %v797 = vrot.slane %v783, %v796
    %v798 = vcombine.high %v790, %v790
    %v799 = vcombine.high %v797, %v797
    %v801 = vunpack.c.l.s4 1966171168
    %v802 = vunpack.c.0.s8 %v801
    %v803 = vlaneseq
    %v804 = vshrl.u32 %v803, 7
    %v805 = vsub.s32 %v802, %v804
    %v806 = vrot.slane %v790, %v805
    %v808 = vunpack.c.l.s4 1966171168
    %v809 = vunpack.c.0.s8 %v808
    %v810 = vlaneseq
    %v811 = vshrl.u32 %v810, 7
    %v812 = vsub.s32 %v809, %v811
    %v813 = vrot.slane %v797, %v812
    %v815 = vunpack.c.l.s4 1966171168
    %v816 = vunpack.c.0.s8 %v815
    %v817 = vlaneseq
    %v818 = vshrl.u32 %v817, 7
    %v819 = vsub.s32 %v816, %v818
    %v820 = vrot.slane %v798, %v819
    %v822 = vunpack.c.l.s4 1966171168
    %v823 = vunpack.c.0.s8 %v822
    %v824 = vlaneseq
    %v825 = vshrl.u32 %v824, 7
    %v826 = vsub.s32 %v823, %v825
    %v827 = vrot.slane %v799, %v826
    %v828 = vcombine.high %v806, %v806
    %v829 = vcombine.high %v813, %v813
    %v830 = vcombine.high %v820, %v820
    %v831 = vcombine.high %v827, %v827
    %v832 = vcombine.high %v381, %v381
    %v834 = vunpack.c.l.s4 1966171168
    %v835 = vunpack.c.0.s8 %v834
    %v836 = vlaneseq
    %v837 = vshrl.u32 %v836, 7
    %v838 = vsub.s32 %v835, %v837
    %v839 = vrot.slane %v381, %v838
    %v841 = vunpack.c.l.s4 1966171168
    %v842 = vunpack.c.0.s8 %v841
    %v843 = vlaneseq
    %v844 = vshrl.u32 %v843, 7
    %v845 = vsub.s32 %v842, %v844
    %v846 = vrot.slane %v832, %v845
    %v847 = vcombine.high %v839, %v839
    %v848 = vcombine.high %v846, %v846
    %v850 = vunpack.c.l.s4 1966171168
    %v851 = vunpack.c.0.s8 %v850
    %v852 = vlaneseq
    %v853 = vshrl.u32 %v852, 7
    %v854 = vsub.s32 %v851, %v853
    %v855 = vrot.slane %v839, %v854
    %v857 = vunpack.c.l.s4 1966171168
    %v858 = vunpack.c.0.s8 %v857
    %v859 = vlaneseq
    %v860 = vshrl.u32 %v859, 7
    %v861 = vsub.s32 %v858, %v860
    %v862 = vrot.slane %v846, %v861
    %v864 = vunpack.c.l.s4 1966171168
    %v865 = vunpack.c.0.s8 %v864
    %v866 = vlaneseq
    %v867 = vshrl.u32 %v866, 7
    %v868 = vsub.s32 %v865, %v867
    %v869 = vrot.slane %v847, %v868
    %v871 = vunpack.c.l.s4 1966171168
    %v872 = vunpack.c.0.s8 %v871
    %v873 = vlaneseq
    %v874 = vshrl.u32 %v873, 7
    %v875 = vsub.s32 %v872, %v874
    %v876 = vrot.slane %v848, %v875
    %v877 = vcombine.high %v855, %v855
    %v878 = vcombine.high %v862, %v862
    %v879 = vcombine.high %v869, %v869
    %v880 = vcombine.high %v876, %v876
    %v881 = vlaneseq
    %v882 = vshrl.u32 %v881, 7
    %v883 = vsub.s32 0, %v882
    %v884 = vrot.slane %v708, %v883
    %v885 = vlaneseq
    %v886 = vshrl.u32 %v885, 7
    %v887 = vsub.s32 0, %v886
    %v888 = vrot.slane %v722, %v887
    %v889 = vlaneseq
    %v890 = vshrl.u32 %v889, 7
    %v891 = vsub.s32 0, %v890
    %v892 = vrot.slane %v730, %v891
    %v893 = vlaneseq
    %v894 = vshrl.u32 %v893, 7
    %v895 = vsub.s32 0, %v894
    %v896 = vrot.slane %v732, %v895
    %v897 = vlaneseq
    %v898 = vshrl.u32 %v897, 7
    %v899 = vsub.s32 0, %v898
    %v900 = vrot.slane %v715, %v899
    %v901 = vlaneseq
    %v902 = vshrl.u32 %v901, 7
    %v903 = vsub.s32 0, %v902
    %v904 = vrot.slane %v729, %v903
    %v905 = vlaneseq
    %v906 = vshrl.u32 %v905, 7
    %v907 = vsub.s32 0, %v906
    %v908 = vrot.slane %v731, %v907
    %v909 = vlaneseq
    %v910 = vshrl.u32 %v909, 7
    %v911 = vsub.s32 0, %v910
    %v912 = vrot.slane %v733, %v911
    %v913 = vlaneseq
    %v914 = vshrl.u32 %v913, 7
    %v915 = vsub.s32 0, %v914
    %v916 = vrot.slane %v757, %v915
    %v917 = vlaneseq
    %v918 = vshrl.u32 %v917, 7
    %v919 = vsub.s32 0, %v918
    %v920 = vrot.slane %v771, %v919
    %v921 = vlaneseq
    %v922 = vshrl.u32 %v921, 7
    %v923 = vsub.s32 0, %v922
    %v924 = vrot.slane %v779, %v923
    %v925 = vlaneseq
    %v926 = vshrl.u32 %v925, 7
    %v927 = vsub.s32 0, %v926
    %v928 = vrot.slane %v781, %v927
    %v929 = vlaneseq
    %v930 = vshrl.u32 %v929, 7
    %v931 = vsub.s32 0, %v930
    %v932 = vrot.slane %v764, %v931
    %v933 = vlaneseq
    %v934 = vshrl.u32 %v933, 7
    %v935 = vsub.s32 0, %v934
    %v936 = vrot.slane %v778, %v935
    %v937 = vlaneseq
    %v938 = vshrl.u32 %v937, 7
    %v939 = vsub.s32 0, %v938
    %v940 = vrot.slane %v780, %v939
    %v941 = vlaneseq
    %v942 = vshrl.u32 %v941, 7
    %v943 = vsub.s32 0, %v942
    %v944 = vrot.slane %v782, %v943
    %v945 = vlaneseq
    %v946 = vshrl.u32 %v945, 7
    %v947 = vsub.s32 0, %v946
    %v948 = vrot.slane %v806, %v947
    %v949 = vlaneseq
    %v950 = vshrl.u32 %v949, 7
    %v951 = vsub.s32 0, %v950
    %v952 = vrot.slane %v820, %v951
    %v953 = vlaneseq
    %v954 = vshrl.u32 %v953, 7
    %v955 = vsub.s32 0, %v954
    %v956 = vrot.slane %v828, %v955
    %v957 = vlaneseq
    %v958 = vshrl.u32 %v957, 7
    %v959 = vsub.s32 0, %v958
    %v960 = vrot.slane %v830, %v959
    %v961 = vlaneseq
    %v962 = vshrl.u32 %v961, 7
    %v963 = vsub.s32 0, %v962
    %v964 = vrot.slane %v813, %v963
    %v965 = vlaneseq
    %v966 = vshrl.u32 %v965, 7
    %v967 = vsub.s32 0, %v966
    %v968 = vrot.slane %v827, %v967
    %v969 = vlaneseq
    %v970 = vshrl.u32 %v969, 7
    %v971 = vsub.s32 0, %v970
    %v972 = vrot.slane %v829, %v971
    %v973 = vlaneseq
    %v974 = vshrl.u32 %v973, 7
    %v975 = vsub.s32 0, %v974
    %v976 = vrot.slane %v831, %v975
    %v977 = vlaneseq
    %v978 = vshrl.u32 %v977, 7
    %v979 = vsub.s32 0, %v978
    %v980 = vrot.slane %v855, %v979
    %v981 = vlaneseq
    %v982 = vshrl.u32 %v981, 7
    %v983 = vsub.s32 0, %v982
    %v984 = vrot.slane %v869, %v983
    %v985 = vlaneseq
    %v986 = vshrl.u32 %v985, 7
    %v987 = vsub.s32 0, %v986
    %v988 = vrot.slane %v877, %v987
    %v989 = vlaneseq
    %v990 = vshrl.u32 %v989, 7
    %v991 = vsub.s32 0, %v990
    %v992 = vrot.slane %v879, %v991
    %v993 = vlaneseq
    %v994 = vshrl.u32 %v993, 7
    %v995 = vsub.s32 0, %v994
    %v996 = vrot.slane %v862, %v995
    %v997 = vlaneseq
    %v998 = vshrl.u32 %v997, 7
    %v999 = vsub.s32 0, %v998
    %v1000 = vrot.slane %v876, %v999
    %v1001 = vlaneseq
    %v1002 = vshrl.u32 %v1001, 7
    %v1003 = vsub.s32 0, %v1002
    %v1004 = vrot.slane %v878, %v1003
    %v1005 = vlaneseq
    %v1006 = vshrl.u32 %v1005, 7
    %v1007 = vsub.s32 0, %v1006
    %v1008 = vrot.slane %v880, %v1007
    %v1041 = vadd.f32 %v884, %v459
    %v1042 = vadd.f32 %v888, %v459
    %v1043 = vadd.f32 %v892, %v459
    %v1044 = vadd.f32 %v896, %v459
    %v1045 = vadd.f32 %v900, %v459
    %v1046 = vadd.f32 %v904, %v459
    %v1047 = vadd.f32 %v908, %v459
    %v1048 = vadd.f32 %v912, %v459
    %v1049 = vadd.f32 %v916, %v532
    %v1050 = vadd.f32 %v920, %v532
    %v1051 = vadd.f32 %v924, %v532
    %v1052 = vadd.f32 %v928, %v532
    %v1053 = vadd.f32 %v932, %v532
    %v1054 = vadd.f32 %v936, %v532
    %v1055 = vadd.f32 %v940, %v532
    %v1056 = vadd.f32 %v944, %v532
    %v1057 = vadd.f32 %v948, %v605
    %v1058 = vadd.f32 %v952, %v605
    %v1059 = vadd.f32 %v956, %v605
    %v1060 = vadd.f32 %v960, %v605
    %v1061 = vadd.f32 %v964, %v605
    %v1062 = vadd.f32 %v968, %v605
    %v1063 = vadd.f32 %v972, %v605
    %v1064 = vadd.f32 %v976, %v605
    %v1065 = vadd.f32 %v980, %v678
    %v1066 = vadd.f32 %v984, %v678
    %v1067 = vadd.f32 %v988, %v678
    %v1068 = vadd.f32 %v992, %v678
    %v1069 = vadd.f32 %v996, %v678
    %v1070 = vadd.f32 %v1000, %v678
    %v1071 = vadd.f32 %v1004, %v678
    %v1072 = vadd.f32 %v1008, %v678
    %v1073 = vtanh.pop %v1041
    %v1074 = vtanh.pop %v1042
    %v1075 = vtanh.pop %v1043
    %v1076 = vtanh.pop %v1044
    %v1077 = vtanh.pop %v1045
    %v1078 = vtanh.pop %v1046
    %v1079 = vtanh.pop %v1047
    %v1080 = vtanh.pop %v1048
    %v1081 = vtanh.pop %v1049
    %v1082 = vtanh.pop %v1050
    %v1083 = vtanh.pop %v1051
    %v1084 = vtanh.pop %v1052
    %v1085 = vtanh.pop %v1053
    %v1086 = vtanh.pop %v1054
    %v1087 = vtanh.pop %v1055
    %v1088 = vtanh.pop %v1056
    %v1089 = vtanh.pop %v1057
    %v1090 = vtanh.pop %v1058
    %v1091 = vtanh.pop %v1059
    %v1092 = vtanh.pop %v1060
    %v1093 = vtanh.pop %v1061
    %v1094 = vtanh.pop %v1062
    %v1095 = vtanh.pop %v1063
    %v1096 = vtanh.pop %v1064
    %v1097 = vtanh.pop %v1065
    %v1098 = vtanh.pop %v1066
    %v1099 = vtanh.pop %v1067
    %v1100 = vtanh.pop %v1068
    %v1101 = vtanh.pop %v1069
    %v1102 = vtanh.pop %v1070
    %v1103 = vtanh.pop %v1071
    %v1104 = vtanh.pop %v1072
    %v1105 = vld [vmem:[%s6] sm:$0x1]
    %v1107 = vlaneseq
    %v1108 = vshrl.u32 %v1107, 7
    %v1109 = vsub.s32 0, %v1108
    %v1110 = vrot.slane %v1105, %v1109
    %v1112 = vmul.f32 %v1073, %v1110
    %v1113 = vmul.f32 %v1074, %v1110
    %v1114 = vmul.f32 %v1075, %v1110
    %v1115 = vmul.f32 %v1076, %v1110
    %v1116 = vmul.f32 %v1077, %v1110
    %v1117 = vmul.f32 %v1078, %v1110
    %v1118 = vmul.f32 %v1079, %v1110
    %v1119 = vmul.f32 %v1080, %v1110
    %v1120 = vmul.f32 %v1081, %v1110
    %v1121 = vmul.f32 %v1082, %v1110
    %v1122 = vmul.f32 %v1083, %v1110
    %v1123 = vmul.f32 %v1084, %v1110
    %v1124 = vmul.f32 %v1085, %v1110
    %v1125 = vmul.f32 %v1086, %v1110
    %v1126 = vmul.f32 %v1087, %v1110
    %v1127 = vmul.f32 %v1088, %v1110
    %v1128 = vmul.f32 %v1089, %v1110
    %v1129 = vmul.f32 %v1090, %v1110
    %v1130 = vmul.f32 %v1091, %v1110
    %v1131 = vmul.f32 %v1092, %v1110
    %v1132 = vmul.f32 %v1093, %v1110
    %v1133 = vmul.f32 %v1094, %v1110
    %v1134 = vmul.f32 %v1095, %v1110
    %v1135 = vmul.f32 %v1096, %v1110
    %v1136 = vmul.f32 %v1097, %v1110
    %v1137 = vmul.f32 %v1098, %v1110
    %v1138 = vmul.f32 %v1099, %v1110
    %v1139 = vmul.f32 %v1100, %v1110
    %v1140 = vmul.f32 %v1101, %v1110
    %v1141 = vmul.f32 %v1102, %v1110
    %v1142 = vmul.f32 %v1103, %v1110
    %v1143 = vmul.f32 %v1104, %v1110
    %vm1144 = vcmask 261120
    %v1145 = vsel %vm1144, %v1112, 0.0
    %1146 = vadd.xlane.f32.xlu0 %v1145
    %v1147 = vpop.xlane.xlu0 %1146
    %v1148 = vsel %vm1144, %v1113, 0.0
    %1149 = vadd.xlane.f32.xlu0 %v1148
    %v1150 = vpop.xlane.xlu0 %1149
    %v1151 = vsel %vm1144, %v1114, 0.0
    %1152 = vadd.xlane.f32.xlu0 %v1151
    %v1153 = vpop.xlane.xlu0 %1152
    %v1154 = vsel %vm1144, %v1115, 0.0
    %1155 = vadd.xlane.f32.xlu0 %v1154
    %v1156 = vpop.xlane.xlu0 %1155
    %v1157 = vsel %vm1144, %v1116, 0.0
    %1158 = vadd.xlane.f32.xlu0 %v1157
    %v1159 = vpop.xlane.xlu0 %1158
    %v1160 = vsel %vm1144, %v1117, 0.0
    %1161 = vadd.xlane.f32.xlu0 %v1160
    %v1162 = vpop.xlane.xlu0 %1161
    %v1163 = vsel %vm1144, %v1118, 0.0
    %1164 = vadd.xlane.f32.xlu0 %v1163
    %v1165 = vpop.xlane.xlu0 %1164
    %v1166 = vsel %vm1144, %v1119, 0.0
    %1167 = vadd.xlane.f32.xlu0 %v1166
    %v1168 = vpop.xlane.xlu0 %1167
    %v1169 = vsel %vm1144, %v1120, 0.0
    %1170 = vadd.xlane.f32.xlu0 %v1169
    %v1171 = vpop.xlane.xlu0 %1170
    %v1172 = vsel %vm1144, %v1121, 0.0
    %1173 = vadd.xlane.f32.xlu0 %v1172
    %v1174 = vpop.xlane.xlu0 %1173
    %v1175 = vsel %vm1144, %v1122, 0.0
    %1176 = vadd.xlane.f32.xlu0 %v1175
    %v1177 = vpop.xlane.xlu0 %1176
    %v1178 = vsel %vm1144, %v1123, 0.0
    %1179 = vadd.xlane.f32.xlu0 %v1178
    %v1180 = vpop.xlane.xlu0 %1179
    %v1181 = vsel %vm1144, %v1124, 0.0
    %1182 = vadd.xlane.f32.xlu0 %v1181
    %v1183 = vpop.xlane.xlu0 %1182
    %v1184 = vsel %vm1144, %v1125, 0.0
    %1185 = vadd.xlane.f32.xlu0 %v1184
    %v1186 = vpop.xlane.xlu0 %1185
    %v1187 = vsel %vm1144, %v1126, 0.0
    %1188 = vadd.xlane.f32.xlu0 %v1187
    %v1189 = vpop.xlane.xlu0 %1188
    %v1190 = vsel %vm1144, %v1127, 0.0
    %1191 = vadd.xlane.f32.xlu0 %v1190
    %v1192 = vpop.xlane.xlu0 %1191
    %v1193 = vsel %vm1144, %v1128, 0.0
    %1194 = vadd.xlane.f32.xlu0 %v1193
    %v1195 = vpop.xlane.xlu0 %1194
    %v1196 = vsel %vm1144, %v1129, 0.0
    %1197 = vadd.xlane.f32.xlu0 %v1196
    %v1198 = vpop.xlane.xlu0 %1197
    %v1199 = vsel %vm1144, %v1130, 0.0
    %1200 = vadd.xlane.f32.xlu0 %v1199
    %v1201 = vpop.xlane.xlu0 %1200
    %v1202 = vsel %vm1144, %v1131, 0.0
    %1203 = vadd.xlane.f32.xlu0 %v1202
    %v1204 = vpop.xlane.xlu0 %1203
    %v1205 = vsel %vm1144, %v1132, 0.0
    %1206 = vadd.xlane.f32.xlu0 %v1205
    %v1207 = vpop.xlane.xlu0 %1206
    %v1208 = vsel %vm1144, %v1133, 0.0
    %1209 = vadd.xlane.f32.xlu0 %v1208
    %v1210 = vpop.xlane.xlu0 %1209
    %v1211 = vsel %vm1144, %v1134, 0.0
    %1212 = vadd.xlane.f32.xlu0 %v1211
    %v1213 = vpop.xlane.xlu0 %1212
    %v1214 = vsel %vm1144, %v1135, 0.0
    %1215 = vadd.xlane.f32.xlu0 %v1214
    %v1216 = vpop.xlane.xlu0 %1215
    %v1217 = vsel %vm1144, %v1136, 0.0
    %1218 = vadd.xlane.f32.xlu0 %v1217
    %v1219 = vpop.xlane.xlu0 %1218
    %v1220 = vsel %vm1144, %v1137, 0.0
    %1221 = vadd.xlane.f32.xlu0 %v1220
    %v1222 = vpop.xlane.xlu0 %1221
    %v1223 = vsel %vm1144, %v1138, 0.0
    %1224 = vadd.xlane.f32.xlu0 %v1223
    %v1225 = vpop.xlane.xlu0 %1224
    %v1226 = vsel %vm1144, %v1139, 0.0
    %1227 = vadd.xlane.f32.xlu0 %v1226
    %v1228 = vpop.xlane.xlu0 %1227
    %v1229 = vsel %vm1144, %v1140, 0.0
    %1230 = vadd.xlane.f32.xlu0 %v1229
    %v1231 = vpop.xlane.xlu0 %1230
    %v1232 = vsel %vm1144, %v1141, 0.0
    %1233 = vadd.xlane.f32.xlu0 %v1232
    %v1234 = vpop.xlane.xlu0 %1233
    %v1235 = vsel %vm1144, %v1142, 0.0
    %1236 = vadd.xlane.f32.xlu0 %v1235
    %v1237 = vpop.xlane.xlu0 %1236
    %v1238 = vsel %vm1144, %v1143, 0.0
    %1239 = vadd.xlane.f32.xlu0 %v1238
    %v1240 = vpop.xlane.xlu0 %1239
    %v1241 = vlaneseq
    %v1242 = vand.u32 %v1241, 127
    %v1243 = vld [vmem:[%s3] sm:$0x1]
    %v1244 = vld [vmem:[%s3 + $0x1] sm:$0x1]
    %v1245 = vld [vmem:[%s3 + $0x2] sm:$0x1]
    %v1246 = vld [vmem:[%s3 + $0x3] sm:$0x1]
    %v1247 = vlaneseq
    %v1248 = vshrl.u32 %v1247, 7
    %v1249 = vsub.s32 0, %v1248
    %v1250 = vrot.slane %v1243, %v1249
    %v1251 = vlaneseq
    %v1252 = vshrl.u32 %v1251, 7
    %v1253 = vsub.s32 0, %v1252
    %v1254 = vrot.slane %v1244, %v1253
    %v1255 = vlaneseq
    %v1256 = vshrl.u32 %v1255, 7
    %v1257 = vsub.s32 0, %v1256
    %v1258 = vrot.slane %v1245, %v1257
    %v1259 = vlaneseq
    %v1260 = vshrl.u32 %v1259, 7
    %v1261 = vsub.s32 0, %v1260
    %v1262 = vrot.slane %v1246, %v1261
    %1263 = vset.pattern.permute.xlu0 0
    %1264 = vperm.xlu0 %1263, %v1250
    %v1265 = vpop.permute.xlu0 %1264
    %1266 = vset.pattern.permute.xlu0 0
    %1267 = vperm.xlu0 %1266, %v1254
    %v1268 = vpop.permute.xlu0 %1267
    %1269 = vset.pattern.permute.xlu0 0
    %1270 = vperm.xlu0 %1269, %v1258
    %v1271 = vpop.permute.xlu0 %1270
    %1272 = vset.pattern.permute.xlu0 0
    %1273 = vperm.xlu0 %1272, %v1262
    %v1274 = vpop.permute.xlu0 %1273
    %vm1275 = vcmp.lt.s32.totalorder %v1242, %v1265
    %vm1276 = vcmp.lt.s32.totalorder %v1242, %v1268
    %vm1277 = vcmp.lt.s32.totalorder %v1242, %v1271
    %vm1278 = vcmp.lt.s32.totalorder %v1242, %v1274
    %v1311 = vlaneseq
    %v1312 = vshrl.u32 %v1311, 7
    %v1313 = vsub.s32 %v1242, %v1312
    %v1314 = vrot.slane %v1147, %v1313
    %v1315 = vlaneseq
    %v1316 = vshrl.u32 %v1315, 7
    %v1317 = vsub.s32 %v1242, %v1316
    %v1318 = vrot.slane %v1150, %v1317
    %v1319 = vlaneseq
    %v1320 = vshrl.u32 %v1319, 7
    %v1321 = vsub.s32 %v1242, %v1320
    %v1322 = vrot.slane %v1153, %v1321
    %v1323 = vlaneseq
    %v1324 = vshrl.u32 %v1323, 7
    %v1325 = vsub.s32 %v1242, %v1324
    %v1326 = vrot.slane %v1156, %v1325
    %v1327 = vlaneseq
    %v1328 = vshrl.u32 %v1327, 7
    %v1329 = vsub.s32 %v1242, %v1328
    %v1330 = vrot.slane %v1159, %v1329
    %v1331 = vlaneseq
    %v1332 = vshrl.u32 %v1331, 7
    %v1333 = vsub.s32 %v1242, %v1332
    %v1334 = vrot.slane %v1162, %v1333
    %v1335 = vlaneseq
    %v1336 = vshrl.u32 %v1335, 7
    %v1337 = vsub.s32 %v1242, %v1336
    %v1338 = vrot.slane %v1165, %v1337
    %v1339 = vlaneseq
    %v1340 = vshrl.u32 %v1339, 7
    %v1341 = vsub.s32 %v1242, %v1340
    %v1342 = vrot.slane %v1168, %v1341
    %v1343 = vlaneseq
    %v1344 = vshrl.u32 %v1343, 7
    %v1345 = vsub.s32 %v1242, %v1344
    %v1346 = vrot.slane %v1171, %v1345
    %v1347 = vlaneseq
    %v1348 = vshrl.u32 %v1347, 7
    %v1349 = vsub.s32 %v1242, %v1348
    %v1350 = vrot.slane %v1174, %v1349
    %v1351 = vlaneseq
    %v1352 = vshrl.u32 %v1351, 7
    %v1353 = vsub.s32 %v1242, %v1352
    %v1354 = vrot.slane %v1177, %v1353
    %v1355 = vlaneseq
    %v1356 = vshrl.u32 %v1355, 7
    %v1357 = vsub.s32 %v1242, %v1356
    %v1358 = vrot.slane %v1180, %v1357
    %v1359 = vlaneseq
    %v1360 = vshrl.u32 %v1359, 7
    %v1361 = vsub.s32 %v1242, %v1360
    %v1362 = vrot.slane %v1183, %v1361
    %v1363 = vlaneseq
    %v1364 = vshrl.u32 %v1363, 7
    %v1365 = vsub.s32 %v1242, %v1364
    %v1366 = vrot.slane %v1186, %v1365
    %v1367 = vlaneseq
    %v1368 = vshrl.u32 %v1367, 7
    %v1369 = vsub.s32 %v1242, %v1368
    %v1370 = vrot.slane %v1189, %v1369
    %v1371 = vlaneseq
    %v1372 = vshrl.u32 %v1371, 7
    %v1373 = vsub.s32 %v1242, %v1372
    %v1374 = vrot.slane %v1192, %v1373
    %v1375 = vlaneseq
    %v1376 = vshrl.u32 %v1375, 7
    %v1377 = vsub.s32 %v1242, %v1376
    %v1378 = vrot.slane %v1195, %v1377
    %v1379 = vlaneseq
    %v1380 = vshrl.u32 %v1379, 7
    %v1381 = vsub.s32 %v1242, %v1380
    %v1382 = vrot.slane %v1198, %v1381
    %v1383 = vlaneseq
    %v1384 = vshrl.u32 %v1383, 7
    %v1385 = vsub.s32 %v1242, %v1384
    %v1386 = vrot.slane %v1201, %v1385
    %v1387 = vlaneseq
    %v1388 = vshrl.u32 %v1387, 7
    %v1389 = vsub.s32 %v1242, %v1388
    %v1390 = vrot.slane %v1204, %v1389
    %v1391 = vlaneseq
    %v1392 = vshrl.u32 %v1391, 7
    %v1393 = vsub.s32 %v1242, %v1392
    %v1394 = vrot.slane %v1207, %v1393
    %v1395 = vlaneseq
    %v1396 = vshrl.u32 %v1395, 7
    %v1397 = vsub.s32 %v1242, %v1396
    %v1398 = vrot.slane %v1210, %v1397
    %v1399 = vlaneseq
    %v1400 = vshrl.u32 %v1399, 7
    %v1401 = vsub.s32 %v1242, %v1400
    %v1402 = vrot.slane %v1213, %v1401
    %v1403 = vlaneseq
    %v1404 = vshrl.u32 %v1403, 7
    %v1405 = vsub.s32 %v1242, %v1404
    %v1406 = vrot.slane %v1216, %v1405
    %v1407 = vlaneseq
    %v1408 = vshrl.u32 %v1407, 7
    %v1409 = vsub.s32 %v1242, %v1408
    %v1410 = vrot.slane %v1219, %v1409
    %v1411 = vlaneseq
    %v1412 = vshrl.u32 %v1411, 7
    %v1413 = vsub.s32 %v1242, %v1412
    %v1414 = vrot.slane %v1222, %v1413
    %v1415 = vlaneseq
    %v1416 = vshrl.u32 %v1415, 7
    %v1417 = vsub.s32 %v1242, %v1416
    %v1418 = vrot.slane %v1225, %v1417
    %v1419 = vlaneseq
    %v1420 = vshrl.u32 %v1419, 7
    %v1421 = vsub.s32 %v1242, %v1420
    %v1422 = vrot.slane %v1228, %v1421
    %v1423 = vlaneseq
    %v1424 = vshrl.u32 %v1423, 7
    %v1425 = vsub.s32 %v1242, %v1424
    %v1426 = vrot.slane %v1231, %v1425
    %v1427 = vlaneseq
    %v1428 = vshrl.u32 %v1427, 7
    %v1429 = vsub.s32 %v1242, %v1428
    %v1430 = vrot.slane %v1234, %v1429
    %v1431 = vlaneseq
    %v1432 = vshrl.u32 %v1431, 7
    %v1433 = vsub.s32 %v1242, %v1432
    %v1434 = vrot.slane %v1237, %v1433
    %v1435 = vlaneseq
    %v1436 = vshrl.u32 %v1435, 7
    %v1437 = vsub.s32 %v1242, %v1436
    %v1438 = vrot.slane %v1240, %v1437
    %vm1439 = vcmask 1041409
    %v1440 = vsel %vm1439, %v1318, %v1314
    %vm1441 = vcmask 1042434
    %v1442 = vsel %vm1441, %v1322, %v1440
    %vm1443 = vcmask 1043459
    %v1444 = vsel %vm1443, %v1326, %v1442
    %vm1445 = vcmask 1044484
    %v1446 = vsel %vm1445, %v1330, %v1444
    %vm1447 = vcmask 1045509
    %v1448 = vsel %vm1447, %v1334, %v1446
    %vm1449 = vcmask 1046534
    %v1450 = vsel %vm1449, %v1338, %v1448
    %vm1451 = vcmask 1047559
    %v1452 = vsel %vm1451, %v1342, %v1450
    %v1453 = vsel %vm1439, %v1350, %v1346
    %v1454 = vsel %vm1441, %v1354, %v1453
    %v1455 = vsel %vm1443, %v1358, %v1454
    %v1456 = vsel %vm1445, %v1362, %v1455
    %v1457 = vsel %vm1447, %v1366, %v1456
    %v1458 = vsel %vm1449, %v1370, %v1457
    %v1459 = vsel %vm1451, %v1374, %v1458
    %v1460 = vsel %vm1439, %v1382, %v1378
    %v1461 = vsel %vm1441, %v1386, %v1460
    %v1462 = vsel %vm1443, %v1390, %v1461
    %v1463 = vsel %vm1445, %v1394, %v1462
    %v1464 = vsel %vm1447, %v1398, %v1463
    %v1465 = vsel %vm1449, %v1402, %v1464
    %v1466 = vsel %vm1451, %v1406, %v1465
    %v1467 = vsel %vm1439, %v1414, %v1410
    %v1468 = vsel %vm1441, %v1418, %v1467
    %v1469 = vsel %vm1443, %v1422, %v1468
    %v1470 = vsel %vm1445, %v1426, %v1469
    %v1471 = vsel %vm1447, %v1430, %v1470
    %v1472 = vsel %vm1449, %v1434, %v1471
    %v1473 = vsel %vm1451, %v1438, %v1472
    %v1478 = vsel %vm1275, %v1452, -1000000.0
    %v1479 = vsel %vm1276, %v1459, -1000000.0
    %v1480 = vsel %vm1277, %v1466, -1000000.0
    %v1481 = vsel %vm1278, %v1473, -1000000.0
    %vm1482 = vcmask 64512
    %v1483 = vsel %vm1482, %v1478, -inf
    %1484 = vmax.xlane.f32.xlu0 %v1483
    %v1485 = vpop.xlane.xlu0 %1484
    %v1486 = vsel %vm1482, %v1479, -inf
    %1487 = vmax.xlane.f32.xlu0 %v1486
    %v1488 = vpop.xlane.xlu0 %1487
    %v1489 = vsel %vm1482, %v1480, -inf
    %1490 = vmax.xlane.f32.xlu0 %v1489
    %v1491 = vpop.xlane.xlu0 %1490
    %v1492 = vsel %vm1482, %v1481, -inf
    %1493 = vmax.xlane.f32.xlu0 %v1492
    %v1494 = vpop.xlane.xlu0 %1493
    %v1495 = vsub.f32 %v1478, %v1485
    %v1496 = vsub.f32 %v1479, %v1488
    %v1497 = vsub.f32 %v1480, %v1491
    %v1498 = vsub.f32 %v1481, %v1494
    %v1499 = vmul.f32 %v1495, 1.442695
    %v1500 = vpow.pop %v1499
    %v1501 = vmul.f32 %v1496, 1.442695
    %v1502 = vpow.pop %v1501
    %v1503 = vmul.f32 %v1497, 1.442695
    %v1504 = vpow.pop %v1503
    %v1505 = vmul.f32 %v1498, 1.442695
    %v1506 = vpow.pop %v1505
    %v1507 = vsel %vm1482, %v1500, 0.0
    %1508 = vadd.xlane.f32.xlu0 %v1507
    %v1509 = vpop.xlane.xlu0 %1508
    %v1510 = vsel %vm1482, %v1502, 0.0
    %1511 = vadd.xlane.f32.xlu0 %v1510
    %v1512 = vpop.xlane.xlu0 %1511
    %v1513 = vsel %vm1482, %v1504, 0.0
    %1514 = vadd.xlane.f32.xlu0 %v1513
    %v1515 = vpop.xlane.xlu0 %1514
    %v1516 = vsel %vm1482, %v1506, 0.0
    %1517 = vadd.xlane.f32.xlu0 %v1516
    %v1518 = vpop.xlane.xlu0 %1517
    %v1519 = vrcp.pop %v1509
    %v1520 = vrcp.pop %v1512
    %v1521 = vrcp.pop %v1515
    %v1522 = vrcp.pop %v1518
    %v1523 = vmul.f32 %v1500, %v1519
    %v1524 = vmul.f32 %v1502, %v1520
    %v1525 = vmul.f32 %v1504, %v1521
    %v1526 = vmul.f32 %v1506, %v1522
    %v1527 = vld [vmem:[#allocation7] sm:$0xff]
    %v1528 = vld [vmem:[#allocation7 + $0x8] sm:$0xff]
    %v1529 = vld [vmem:[#allocation7 + $0x10] sm:$0xff]
    %v1530 = vld [vmem:[#allocation7 + $0x18] sm:$0xff]
    %v1532 = vsel %vm1482, %v1523, 0
    %1534 = vmatprep.subr.mxu0 0.0
    %1535 = vmatpush1.msra.mxu0 %v1527
    %1536 = vmatprep.subr.mxu0 0.0
    %1537 = vmatpush1.msra.mxu0 0.0
    %1538 = vmatprep.subr.mxu0 0.0
    %1539 = vmatpush1.msra.mxu0 0.0
    %1540 = vmatprep.subr.mxu0 0.0
    %1541 = vmatpush1.msra.mxu0 0.0
    %1542 = vmatprep.subr.mxu0 0.0
    %1543 = vmatpush1.msra.mxu0 0.0
    %1544 = vmatprep.subr.mxu0 0.0
    %1545 = vmatpush1.msra.mxu0 0.0
    %1546 = vmatprep.subr.mxu0 0.0
    %1547 = vmatpush1.msra.mxu0 0.0
    %1548 = vmatprep.subr.mxu0 0.0
    %1549 = vmatpush1.msra.mxu0 0.0
    %1550 = vmatprep.subr.mxu0 0.0
    %1551 = vmatpush1.msra.mxu0 0.0
    %1552 = vmatprep.subr.mxu0 0.0
    %1553 = vmatpush1.msra.mxu0 0.0
    %1554 = vmatprep.subr.mxu0 0.0
    %1555 = vmatpush1.msra.mxu0 0.0
    %1556 = vmatprep.subr.mxu0 0.0
    %1557 = vmatpush1.msra.mxu0 0.0
    %1558 = vmatprep.subr.mxu0 0.0
    %1559 = vmatpush1.msra.mxu0 0.0
    %1560 = vmatprep.subr.mxu0 0.0
    %1561 = vmatpush1.msra.mxu0 0.0
    %1562 = vmatprep.subr.mxu0 0.0
    %1563 = vmatpush1.msra.mxu0 0.0
    %1564 = vmatprep.subr.mxu0 0.0
    %1565 = vmatpush1.msra.mxu0 0.0
    %1566 = vmatprep.subr.mxu0 0.0
    %1567 = vmatpush1.msra.mxu0 0.0
    %1568 = vmatprep.subr.mxu0 0.0
    %1569 = vmatpush1.msra.mxu0 0.0
    %1570 = vmatprep.subr.mxu0 0.0
    %1571 = vmatpush1.msra.mxu0 0.0
    %1572 = vmatprep.subr.mxu0 0.0
    %1573 = vmatpush1.msra.mxu0 0.0
    %1574 = vmatprep.subr.mxu0 0.0
    %1575 = vmatpush1.msra.mxu0 0.0
    %1576 = vmatprep.subr.mxu0 0.0
    %1577 = vmatpush1.msra.mxu0 0.0
    %1578 = vmatprep.subr.mxu0 0.0
    %1579 = vmatpush1.msra.mxu0 0.0
    %1580 = vmatprep.subr.mxu0 0.0
    %1581 = vmatpush1.msra.mxu0 0.0
    %1582 = vmatprep.subr.mxu0 0.0
    %1583 = vmatpush1.msra.mxu0 0.0
    %1584 = vmatprep.subr.mxu0 0.0
    %1585 = vmatpush1.msra.mxu0 0.0
    %1586 = vmatprep.subr.mxu0 0.0
    %1587 = vmatpush1.msra.mxu0 0.0
    %1588 = vmatprep.subr.mxu0 0.0
    %1589 = vmatpush1.msra.mxu0 0.0
    %1590 = vmatprep.subr.mxu0 0.0
    %1591 = vmatpush1.msra.mxu0 0.0
    %1592 = vmatprep.subr.mxu0 0.0
    %1593 = vmatpush1.msra.mxu0 0.0
    %1594 = vmatprep.subr.mxu0 0.0
    %1595 = vmatpush1.msra.mxu0 0.0
    %1596 = vmatprep.subr.mxu0 0.0
    %1597 = vmatpush1.msra.mxu0 0.0
    %1598 = vmatprep.mubr.f32.mxu0 0.0
    %1599 = vmatmul.mubr.f32.gmra.mrb[0].mxu0 %v1532
    %v1600 = vpop.f32.mrb[0].mxu0
    %v1601 = vadd.f32 0.0, %v1600
    %v1602 = vpop.f32.mrb[0].mxu0
    %1603 = vdwg.mxu0
    %v1605 = vsel %vm1482, %v1524, 0
    %1607 = vmatprep.subr.mxu0 0.0
    %1608 = vmatpush1.msra.mxu0 %v1528
    %1609 = vmatprep.subr.mxu0 0.0
    %1610 = vmatpush1.msra.mxu0 0.0
    %1611 = vmatprep.subr.mxu0 0.0
    %1612 = vmatpush1.msra.mxu0 0.0
    %1613 = vmatprep.subr.mxu0 0.0
    %1614 = vmatpush1.msra.mxu0 0.0
    %1615 = vmatprep.subr.mxu0 0.0
    %1616 = vmatpush1.msra.mxu0 0.0
    %1617 = vmatprep.subr.mxu0 0.0
    %1618 = vmatpush1.msra.mxu0 0.0
    %1619 = vmatprep.subr.mxu0 0.0
    %1620 = vmatpush1.msra.mxu0 0.0
    %1621 = vmatprep.subr.mxu0 0.0
    %1622 = vmatpush1.msra.mxu0 0.0
    %1623 = vmatprep.subr.mxu0 0.0
    %1624 = vmatpush1.msra.mxu0 0.0
    %1625 = vmatprep.subr.mxu0 0.0
    %1626 = vmatpush1.msra.mxu0 0.0
    %1627 = vmatprep.subr.mxu0 0.0
    %1628 = vmatpush1.msra.mxu0 0.0
    %1629 = vmatprep.subr.mxu0 0.0
    %1630 = vmatpush1.msra.mxu0 0.0
    %1631 = vmatprep.subr.mxu0 0.0
    %1632 = vmatpush1.msra.mxu0 0.0
    %1633 = vmatprep.subr.mxu0 0.0
    %1634 = vmatpush1.msra.mxu0 0.0
    %1635 = vmatprep.subr.mxu0 0.0
    %1636 = vmatpush1.msra.mxu0 0.0
    %1637 = vmatprep.subr.mxu0 0.0
    %1638 = vmatpush1.msra.mxu0 0.0
    %1639 = vmatprep.subr.mxu0 0.0
    %1640 = vmatpush1.msra.mxu0 0.0
    %1641 = vmatprep.subr.mxu0 0.0
    %1642 = vmatpush1.msra.mxu0 0.0
    %1643 = vmatprep.subr.mxu0 0.0
    %1644 = vmatpush1.msra.mxu0 0.0
    %1645 = vmatprep.subr.mxu0 0.0
    %1646 = vmatpush1.msra.mxu0 0.0
    %1647 = vmatprep.subr.mxu0 0.0
    %1648 = vmatpush1.msra.mxu0 0.0
    %1649 = vmatprep.subr.mxu0 0.0
    %1650 = vmatpush1.msra.mxu0 0.0
    %1651 = vmatprep.subr.mxu0 0.0
    %1652 = vmatpush1.msra.mxu0 0.0
    %1653 = vmatprep.subr.mxu0 0.0
    %1654 = vmatpush1.msra.mxu0 0.0
    %1655 = vmatprep.subr.mxu0 0.0
    %1656 = vmatpush1.msra.mxu0 0.0
    %1657 = vmatprep.subr.mxu0 0.0
    %1658 = vmatpush1.msra.mxu0 0.0
    %1659 = vmatprep.subr.mxu0 0.0
    %1660 = vmatpush1.msra.mxu0 0.0
    %1661 = vmatprep.subr.mxu0 0.0
    %1662 = vmatpush1.msra.mxu0 0.0
    %1663 = vmatprep.subr.mxu0 0.0
    %1664 = vmatpush1.msra.mxu0 0.0
    %1665 = vmatprep.subr.mxu0 0.0
    %1666 = vmatpush1.msra.mxu0 0.0
    %1667 = vmatprep.subr.mxu0 0.0
    %1668 = vmatpush1.msra.mxu0 0.0
    %1669 = vmatprep.subr.mxu0 0.0
    %1670 = vmatpush1.msra.mxu0 0.0
    %1671 = vmatprep.mubr.f32.mxu0 0.0
    %1672 = vmatmul.mubr.f32.gmra.mrb[0].mxu0 %v1605
    %v1673 = vpop.f32.mrb[0].mxu0
    %v1674 = vadd.f32 0.0, %v1673
    %v1675 = vpop.f32.mrb[0].mxu0
    %1676 = vdwg.mxu0
    %v1678 = vsel %vm1482, %v1525, 0
    %1680 = vmatprep.subr.mxu0 0.0
    %1681 = vmatpush1.msra.mxu0 %v1529
    %1682 = vmatprep.subr.mxu0 0.0
    %1683 = vmatpush1.msra.mxu0 0.0
    %1684 = vmatprep.subr.mxu0 0.0
    %1685 = vmatpush1.msra.mxu0 0.0
    %1686 = vmatprep.subr.mxu0 0.0
    %1687 = vmatpush1.msra.mxu0 0.0
    %1688 = vmatprep.subr.mxu0 0.0
    %1689 = vmatpush1.msra.mxu0 0.0
    %1690 = vmatprep.subr.mxu0 0.0
    %1691 = vmatpush1.msra.mxu0 0.0
    %1692 = vmatprep.subr.mxu0 0.0
    %1693 = vmatpush1.msra.mxu0 0.0
    %1694 = vmatprep.subr.mxu0 0.0
    %1695 = vmatpush1.msra.mxu0 0.0
    %1696 = vmatprep.subr.mxu0 0.0
    %1697 = vmatpush1.msra.mxu0 0.0
    %1698 = vmatprep.subr.mxu0 0.0
    %1699 = vmatpush1.msra.mxu0 0.0
    %1700 = vmatprep.subr.mxu0 0.0
    %1701 = vmatpush1.msra.mxu0 0.0
    %1702 = vmatprep.subr.mxu0 0.0
    %1703 = vmatpush1.msra.mxu0 0.0
    %1704 = vmatprep.subr.mxu0 0.0
    %1705 = vmatpush1.msra.mxu0 0.0
    %1706 = vmatprep.subr.mxu0 0.0
    %1707 = vmatpush1.msra.mxu0 0.0
    %1708 = vmatprep.subr.mxu0 0.0
    %1709 = vmatpush1.msra.mxu0 0.0
    %1710 = vmatprep.subr.mxu0 0.0
    %1711 = vmatpush1.msra.mxu0 0.0
    %1712 = vmatprep.subr.mxu0 0.0
    %1713 = vmatpush1.msra.mxu0 0.0
    %1714 = vmatprep.subr.mxu0 0.0
    %1715 = vmatpush1.msra.mxu0 0.0
    %1716 = vmatprep.subr.mxu0 0.0
    %1717 = vmatpush1.msra.mxu0 0.0
    %1718 = vmatprep.subr.mxu0 0.0
    %1719 = vmatpush1.msra.mxu0 0.0
    %1720 = vmatprep.subr.mxu0 0.0
    %1721 = vmatpush1.msra.mxu0 0.0
    %1722 = vmatprep.subr.mxu0 0.0
    %1723 = vmatpush1.msra.mxu0 0.0
    %1724 = vmatprep.subr.mxu0 0.0
    %1725 = vmatpush1.msra.mxu0 0.0
    %1726 = vmatprep.subr.mxu0 0.0
    %1727 = vmatpush1.msra.mxu0 0.0
    %1728 = vmatprep.subr.mxu0 0.0
    %1729 = vmatpush1.msra.mxu0 0.0
    %1730 = vmatprep.subr.mxu0 0.0
    %1731 = vmatpush1.msra.mxu0 0.0
    %1732 = vmatprep.subr.mxu0 0.0
    %1733 = vmatpush1.msra.mxu0 0.0
    %1734 = vmatprep.subr.mxu0 0.0
    %1735 = vmatpush1.msra.mxu0 0.0
    %1736 = vmatprep.subr.mxu0 0.0
    %1737 = vmatpush1.msra.mxu0 0.0
    %1738 = vmatprep.subr.mxu0 0.0
    %1739 = vmatpush1.msra.mxu0 0.0
    %1740 = vmatprep.subr.mxu0 0.0
    %1741 = vmatpush1.msra.mxu0 0.0
    %1742 = vmatprep.subr.mxu0 0.0
    %1743 = vmatpush1.msra.mxu0 0.0
    %1744 = vmatprep.mubr.f32.mxu0 0.0
    %1745 = vmatmul.mubr.f32.gmra.mrb[0].mxu0 %v1678
    %v1746 = vpop.f32.mrb[0].mxu0
    %v1747 = vadd.f32 0.0, %v1746
    %v1748 = vpop.f32.mrb[0].mxu0
    %1749 = vdwg.mxu0
    %v1751 = vsel %vm1482, %v1526, 0
    %1753 = vmatprep.subr.mxu0 0.0
    %1754 = vmatpush1.msra.mxu0 %v1530
    %1755 = vmatprep.subr.mxu0 0.0
    %1756 = vmatpush1.msra.mxu0 0.0
    %1757 = vmatprep.subr.mxu0 0.0
    %1758 = vmatpush1.msra.mxu0 0.0
    %1759 = vmatprep.subr.mxu0 0.0
    %1760 = vmatpush1.msra.mxu0 0.0
    %1761 = vmatprep.subr.mxu0 0.0
    %1762 = vmatpush1.msra.mxu0 0.0
    %1763 = vmatprep.subr.mxu0 0.0
    %1764 = vmatpush1.msra.mxu0 0.0
    %1765 = vmatprep.subr.mxu0 0.0
    %1766 = vmatpush1.msra.mxu0 0.0
    %1767 = vmatprep.subr.mxu0 0.0
    %1768 = vmatpush1.msra.mxu0 0.0
    %1769 = vmatprep.subr.mxu0 0.0
    %1770 = vmatpush1.msra.mxu0 0.0
    %1771 = vmatprep.subr.mxu0 0.0
    %1772 = vmatpush1.msra.mxu0 0.0
    %1773 = vmatprep.subr.mxu0 0.0
    %1774 = vmatpush1.msra.mxu0 0.0
    %1775 = vmatprep.subr.mxu0 0.0
    %1776 = vmatpush1.msra.mxu0 0.0
    %1777 = vmatprep.subr.mxu0 0.0
    %1778 = vmatpush1.msra.mxu0 0.0
    %1779 = vmatprep.subr.mxu0 0.0
    %1780 = vmatpush1.msra.mxu0 0.0
    %1781 = vmatprep.subr.mxu0 0.0
    %1782 = vmatpush1.msra.mxu0 0.0
    %1783 = vmatprep.subr.mxu0 0.0
    %1784 = vmatpush1.msra.mxu0 0.0
    %1785 = vmatprep.subr.mxu0 0.0
    %1786 = vmatpush1.msra.mxu0 0.0
    %1787 = vmatprep.subr.mxu0 0.0
    %1788 = vmatpush1.msra.mxu0 0.0
    %1789 = vmatprep.subr.mxu0 0.0
    %1790 = vmatpush1.msra.mxu0 0.0
    %1791 = vmatprep.subr.mxu0 0.0
    %1792 = vmatpush1.msra.mxu0 0.0
    %1793 = vmatprep.subr.mxu0 0.0
    %1794 = vmatpush1.msra.mxu0 0.0
    %1795 = vmatprep.subr.mxu0 0.0
    %1796 = vmatpush1.msra.mxu0 0.0
    %1797 = vmatprep.subr.mxu0 0.0
    %1798 = vmatpush1.msra.mxu0 0.0
    %1799 = vmatprep.subr.mxu0 0.0
    %1800 = vmatpush1.msra.mxu0 0.0
    %1801 = vmatprep.subr.mxu0 0.0
    %1802 = vmatpush1.msra.mxu0 0.0
    %1803 = vmatprep.subr.mxu0 0.0
    %1804 = vmatpush1.msra.mxu0 0.0
    %1805 = vmatprep.subr.mxu0 0.0
    %1806 = vmatpush1.msra.mxu0 0.0
    %1807 = vmatprep.subr.mxu0 0.0
    %1808 = vmatpush1.msra.mxu0 0.0
    %1809 = vmatprep.subr.mxu0 0.0
    %1810 = vmatpush1.msra.mxu0 0.0
    %1811 = vmatprep.subr.mxu0 0.0
    %1812 = vmatpush1.msra.mxu0 0.0
    %1813 = vmatprep.subr.mxu0 0.0
    %1814 = vmatpush1.msra.mxu0 0.0
    %1815 = vmatprep.subr.mxu0 0.0
    %1816 = vmatpush1.msra.mxu0 0.0
    %1817 = vmatprep.mubr.f32.mxu0 0.0
    %1818 = vmatmul.mubr.f32.gmra.mrb[0].mxu0 %v1751
    %v1819 = vpop.f32.mrb[0].mxu0
    %v1820 = vadd.f32 0.0, %v1819
    %v1821 = vpop.f32.mrb[0].mxu0
    %1822 = vdwg.mxu0
    %1823 = vst.msk [vmem:[#allocation10] sm:$0xff] %vm1144, %v1601
    %1824 = vst.msk [vmem:[#allocation10 + $0x8] sm:$0xff] %vm1144, %v1674
    %1825 = vst.msk [vmem:[#allocation10 + $0x10] sm:$0xff] %vm1144, %v1747
    %1826 = vst.msk [vmem:[#allocation10 + $0x18] sm:$0xff] %vm1144, %v1820
    // Predicated region
    $region46: #{tpu_custom_call.1} parent=1 // pred_check
      _
    $region47: #{tpu_custom_call.1} parent=1 // pred_check_branch
      %1828 = sbr.rel (0) target = $region49
    $region48: #{tpu_custom_call.1} parent=1 // pred_region
      %s1830 = ssub.s32 512, 512
      %1831 = vsyncadd [#allocation4], %s1830
      %s1832 = sshll.u32 [#allocation10], 4
      %s1833 = int_to_ptr.vmem [resolvable:$true] %s1832
      %1838 = dma.vmem_to_hbm [thread:$0]  %s1833, 512, %s7, [#allocation4], 128, 128, 8
    $region49: #{tpu_custom_call.1} parent=1 // pred_fallthru
      _
    // Predicated region
    $region50: #{tpu_custom_call.1} parent=1 // pred_check
      _
    $region51: #{tpu_custom_call.1} parent=1 // pred_check_branch
      %1840 = sbr.rel (0) target = $region53
    $region52: #{tpu_custom_call.1} parent=1 // pred_region
      %1841 = dma.done [#allocation4], 512
    $region53: #{tpu_custom_call.1} parent=1 // pred_fallthru
      _
    %1842 = vsyncpa [#allocation3], 1
    %1843 = vsyncpa [#allocation6], 1
    %1844 = vsyncpa [#allocation9], 1
    %1845 = vsyncpa [#allocation4], 1

</llo_original>
